<compile_context>
chip_gen: v7x
topology: tpu7x:2x2x1
jax: 0.10.0
libtpu: 0.0.40
codegen_flags: <defaults>
</compile_context>

<pallas_src>
import jax
import jax.numpy as jnp
import numpy as np
from jax.experimental import pallas as pl
from jax.experimental.pallas import tpu as pltpu

LANES = 128          # lane-dense output width
BP = 8               # padded batch (one f32 sublane tile)


def _rup8(n):
    return ((n + 7) // 8) * 8


def _lstm_kernel(x_ref, hc0_ref, w_ref, out_ref, hncn_ref, hseq_scr):
    # x_ref    : (T*BP, F_in)    time-major, batch padded to BP, flattened
    # hc0_ref  : (2, BP, H)      [0]=h0, [1]=c0 (padded rows zero)
    # w_ref    : (88, 128) slab  rows: [wih^T | whh^T | b | wout^T(pad) | bout(pad)]
    # out_ref  : (T*BP, 128)     lane-dense log_softmax slab
    # hncn_ref : (2, BP, H)      [0]=h_n, [1]=c_n
    # hseq_scr : (T*BP, H)       f32 VMEM scratch
    BPk = hc0_ref.shape[1]
    H = hc0_ref.shape[2]
    TB = x_ref.shape[0]
    T = TB // BPk
    F_in = x_ref.shape[1]

    # Static, sublane-aligned slab offsets (kept in sync with the wrapper).
    o_wih = 0
    o_whh = o_wih + _rup8(F_in)
    o_b = o_whh + _rup8(H)
    o_wout = o_b + 8
    o_bout = o_wout + _rup8(H)

    wih = w_ref[o_wih:o_wih + F_in, :]            # (F_in, 4H)
    whh = w_ref[o_whh:o_whh + H, :]               # (H, 4H)
    b = w_ref[o_b:o_b + 1, :]                     # (1, 4H)
    wout = w_ref[o_wout:o_wout + H, :]            # (H, 128) zero-padded lanes
    bout = w_ref[o_bout:o_bout + 1, :]            # (1, 128) padded lanes = -1e30

    # Whole-sequence input projection: one MXU matmul, bias fused once.
    gx = jnp.dot(x_ref[...], wih, preferred_element_type=jnp.float32) + b   # (T*BP, 4H)

    h = hc0_ref[0].astype(jnp.float32)            # (BP, H)
    c = hc0_ref[1].astype(jnp.float32)            # (BP, H)

    # Serial recurrence, fully unrolled (T small & static). Gate order is (i, f, o, g).
    for t in range(T):
        gates = gx[t * BPk:(t + 1) * BPk, :] + jnp.dot(
            h, whh, preferred_element_type=jnp.float32)                     # (BP, 4H)
        sig = jax.nn.sigmoid(gates)               # one full-width EUP pass
        tnh = jnp.tanh(gates)                     # one full-width EUP pass
        i_g = sig[:, 0 * H:1 * H]
        f_g = sig[:, 1 * H:2 * H]
        o_g = sig[:, 2 * H:3 * H]
        g_g = tnh[:, 3 * H:4 * H]
        c = f_g * c + i_g * g_g
        h = o_g * jnp.tanh(c)
        hseq_scr[t * BPk:(t + 1) * BPk, :] = h    # static-offset slab store

    # Final hidden / cell state, written exactly once (single fused output).
    hncn_ref[0] = h.astype(hncn_ref.dtype)
    hncn_ref[1] = c.astype(hncn_ref.dtype)

    # Lane-dense batched output projection + log_softmax over the whole sequence.
    h_all = hseq_scr[...]                                                   # (T*BP, H)
    logits = jnp.dot(h_all, wout, preferred_element_type=jnp.float32) + bout  # (T*BP, 128)
    m = jnp.max(logits, axis=-1, keepdims=True)
    z = logits - m
    lse = jnp.log(jnp.sum(jnp.exp(z), axis=-1, keepdims=True))
    out_ref[...] = (z - lse).astype(out_ref.dtype)                          # single slab store


def _pad_rows(a, rows):
    out = jnp.zeros((rows, a.shape[1]), a.dtype)
    return out.at[:a.shape[0], :].set(a)


def single_lstm_forward(inputs, h0, c0, params):
    """inputs: (B, T, F_in) batch_first; h0/c0: (1, B, H).
    Returns (log_softmax outputs (B, T, F_out), (h_n, c_n))."""
    B, T, F_in = inputs.shape
    H = h0.shape[-1]
    F_out = params["w_out"].shape[0]
    f32 = jnp.float32

    # ---- Batch pad B -> BP, time-major, flatten to (T*BP, F_in). ----
    x_tm = jnp.transpose(inputs, (1, 0, 2)).astype(f32)                 # (T, B, F_in)
    x_pad = jnp.zeros((T, BP, F_in), f32).at[:, :B, :].set(x_tm)
    x_flat = x_pad.reshape(T * BP, F_in)

    # ---- h0/c0 fused + batch padded. ----
    hc0 = jnp.zeros((2, BP, H), f32)
    hc0 = hc0.at[0, :B, :].set(h0[0].astype(f32)).at[1, :B, :].set(c0[0].astype(f32))

    # ---- Gate reorder: torch order (i, f, g, o) -> kernel order (i, f, o, g). ----
    def reorder(w):  # acts on leading 4H axis
        return jnp.concatenate(
            [w[0:H], w[H:2 * H], w[3 * H:4 * H], w[2 * H:3 * H]], axis=0)

    wih_t = reorder(params["w_ih"].astype(f32)).T                       # (F_in, 4H)
    whh_t = reorder(params["w_hh"].astype(f32)).T                       # (H, 4H)
    b_row = reorder((params["b_ih"] + params["b_hh"]).astype(f32)).reshape(1, 4 * H)

    # ---- Lane-dense output weights: pad to 128 lanes (bias pad = -1e30). ----
    wout_pad = jnp.zeros((H, LANES), f32).at[:, :F_out].set(params["w_out"].astype(f32).T)
    bout_row = jnp.full((1, LANES), f32(-1e30))
    bout_row = bout_row.at[0, :F_out].set(params["b_out"].astype(f32))

    # ---- Pack all constants into one sublane-aligned slab (single input DMA). ----
    w_slab = jnp.concatenate([
        _pad_rows(wih_t, _rup8(F_in)),     # rows [0,8)
        _pad_rows(whh_t, _rup8(H)),        # rows [8,40)
        _pad_rows(b_row, 8),               # rows [40,48)
        _pad_rows(wout_pad, _rup8(H)),     # rows [48,80)
        _pad_rows(bout_row, 8),            # rows [80,88)
    ], axis=0)

    vmem = pl.BlockSpec(memory_space=pltpu.MemorySpace.VMEM)

    out_flat, hncn = pl.pallas_call(
        _lstm_kernel,
        out_shape=(
            jax.ShapeDtypeStruct((T * BP, LANES), inputs.dtype),
            jax.ShapeDtypeStruct((2, BP, H), inputs.dtype),
        ),
        in_specs=[vmem, vmem, vmem],
        out_specs=(vmem, vmem),
        scratch_shapes=[pltpu.VMEM((T * BP, H), jnp.float32)],
    )(x_flat, hc0, w_slab)

    # Strip batch/lane padding.
    outputs = jnp.transpose(
        out_flat.reshape(T, BP, LANES)[:, :B, :F_out], (1, 0, 2))       # (B, T, F_out)
    h_n = hncn[0:1, :B, :]
    c_n = hncn[1:2, :B, :]
    return outputs, (h_n, c_n)


def _reference_forward(inputs, h0, c0, params):
    """Pure-JAX reference matching torch.nn.LSTM + Linear + log_softmax."""
    B, T, F_in = inputs.shape
    H = h0.shape[-1]
    w_ih, w_hh = params["w_ih"], params["w_hh"]
    b = params["b_ih"] + params["b_hh"]
    h, c = h0[0], c0[0]
    outs = []
    for t in range(T):
        x_t = inputs[:, t, :]
        gates = x_t @ w_ih.T + h @ w_hh.T + b
        i_g = jax.nn.sigmoid(gates[:, 0 * H:1 * H])
        f_g = jax.nn.sigmoid(gates[:, 1 * H:2 * H])
        g_g = jnp.tanh(gates[:, 2 * H:3 * H])
        o_g = jax.nn.sigmoid(gates[:, 3 * H:4 * H])
        c = f_g * c + i_g * g_g
        h = o_g * jnp.tanh(c)
        logits = h @ params["w_out"].T + params["b_out"]
        outs.append(jax.nn.log_softmax(logits, axis=-1))
    return jnp.stack(outs, axis=1), (h[None], c[None])


def init_params(key, feature_size, hidden_size):
    ks = jax.random.split(key, 6)
    bound = 1.0 / np.sqrt(hidden_size)
    u = lambda k, shape: jax.random.uniform(k, shape, jnp.float32, -bound, bound)
    return {
        "w_ih": u(ks[0], (4 * hidden_size, feature_size)),
        "w_hh": u(ks[1], (4 * hidden_size, hidden_size)),
        "b_ih": u(ks[2], (4 * hidden_size,)),
        "b_hh": u(ks[3], (4 * hidden_size,)),
        "w_out": u(ks[4], (feature_size, hidden_size)),
        "b_out": u(ks[5], (feature_size,)),
    }


if __name__ == "__main__":
    B, T, F_in, H = 2, 8, 4, 32

    key = jax.random.PRNGKey(0)
    k_p, k_x, k_h, k_c = jax.random.split(key, 4)

    params = init_params(k_p, F_in, H)
    inputs = jax.random.normal(k_x, (B, T, F_in), jnp.float32)
    h0 = jax.random.normal(k_h, (1, B, H), jnp.float32)
    c0 = jax.random.normal(k_c, (1, B, H), jnp.float32)

    fwd = jax.jit(single_lstm_forward)
    outputs, (h_n, c_n) = fwd(inputs, h0, c0, params)
    jax.block_until_ready((outputs, h_n, c_n))

    ref_out, (ref_h, ref_c) = _reference_forward(inputs, h0, c0, params)
    np.testing.assert_allclose(np.asarray(outputs), np.asarray(ref_out),
                               rtol=1e-5, atol=1e-5)
    np.testing.assert_allclose(np.asarray(h_n), np.asarray(ref_h),
                               rtol=1e-5, atol=1e-5)
    np.testing.assert_allclose(np.asarray(c_n), np.asarray(ref_c),
                               rtol=1e-5, atol=1e-5)

    print("KERNEL_OK")
</pallas_src>

<mosaic_0001>
module attributes {stable_mosaic.version = 11 : i64} {
  func.func @_lstm_kernel(%arg0: memref<64x4xf32, #tpu.memory_space<vmem>>, %arg1: memref<2x8x32xf32, #tpu.memory_space<vmem>>, %arg2: memref<88x128xf32, #tpu.memory_space<vmem>>, %arg3: memref<64x128xf32, #tpu.memory_space<vmem>>, %arg4: memref<2x8x32xf32, #tpu.memory_space<vmem>>, %arg5: memref<64x32xf32, #tpu.memory_space<vmem>>) attributes {dimension_semantics = [], scalar_prefetch = 0 : i64, scratch_operands = 1 : i64, tpu.core_type = #tpu.core_type<tc>} {
    %c0 = arith.constant 0 : index
    %c0_0 = arith.constant 0 : index
    %0 = vector.load %arg2[%c0, %c0_0] : memref<88x128xf32, #tpu.memory_space<vmem>>, vector<4x128xf32>
    %c8 = arith.constant 8 : index
    %c0_1 = arith.constant 0 : index
    %1 = vector.load %arg2[%c8, %c0_1] : memref<88x128xf32, #tpu.memory_space<vmem>>, vector<32x128xf32>
    %c40 = arith.constant 40 : index
    %c0_2 = arith.constant 0 : index
    %2 = vector.load %arg2[%c40, %c0_2] : memref<88x128xf32, #tpu.memory_space<vmem>>, vector<1x128xf32>
    %c48 = arith.constant 48 : index
    %c0_3 = arith.constant 0 : index
    %3 = vector.load %arg2[%c48, %c0_3] : memref<88x128xf32, #tpu.memory_space<vmem>>, vector<32x128xf32>
    %c80 = arith.constant 80 : index
    %c0_4 = arith.constant 0 : index
    %4 = vector.load %arg2[%c80, %c0_4] : memref<88x128xf32, #tpu.memory_space<vmem>>, vector<1x128xf32>
    %c0_5 = arith.constant 0 : index
    %c0_6 = arith.constant 0 : index
    %5 = vector.load %arg0[%c0_5, %c0_6] : memref<64x4xf32, #tpu.memory_space<vmem>>, vector<64x4xf32>
    %cst = arith.constant dense<0.000000e+00> : vector<64x128xf32>
    %6 = tpu.matmul %5, %0, %cst {dimension_numbers = #tpu.dot_dimension_numbers<[1], [0], [0], [1], [0, 0, 1, 1], [], []>} : vector<64x4xf32>, vector<4x128xf32>, vector<64x128xf32> -> vector<64x128xf32>
    %7 = vector.broadcast %2 : vector<1x128xf32> to vector<64x128xf32>
    %8 = arith.addf %6, %7 : vector<64x128xf32>
    %c0_7 = arith.constant 0 : index
    %c0_8 = arith.constant 0 : index
    %c0_9 = arith.constant 0 : index
    %9 = vector.load %arg1[%c0_7, %c0_8, %c0_9] : memref<2x8x32xf32, #tpu.memory_space<vmem>>, vector<1x8x32xf32>
    %10 = vector.shape_cast %9 : vector<1x8x32xf32> to vector<8x32xf32>
    %c1 = arith.constant 1 : index
    %c0_10 = arith.constant 0 : index
    %c0_11 = arith.constant 0 : index
    %11 = vector.load %arg1[%c1, %c0_10, %c0_11] : memref<2x8x32xf32, #tpu.memory_space<vmem>>, vector<1x8x32xf32>
    %12 = vector.shape_cast %11 : vector<1x8x32xf32> to vector<8x32xf32>
    %13 = vector.extract_strided_slice %8 {offsets = [0, 0], sizes = [8, 128], strides = [1, 1]} : vector<64x128xf32> to vector<8x128xf32>
    %cst_12 = arith.constant dense<0.000000e+00> : vector<8x128xf32>
    %14 = tpu.matmul %10, %1, %cst_12 {dimension_numbers = #tpu.dot_dimension_numbers<[1], [0], [0], [1], [0, 0, 1, 1], [], []>} : vector<8x32xf32>, vector<32x128xf32>, vector<8x128xf32> -> vector<8x128xf32>
    %15 = arith.addf %13, %14 : vector<8x128xf32>
    %16 = arith.negf %15 : vector<8x128xf32>
    %17 = math.exp %16 : vector<8x128xf32>
    %cst_13 = arith.constant 1.000000e+00 : f32
    %18 = vector.broadcast %cst_13 : f32 to vector<8x128xf32>
    %19 = arith.addf %18, %17 : vector<8x128xf32>
    %20 = arith.divf %18, %19 : vector<8x128xf32>
    %21 = math.tanh %15 : vector<8x128xf32>
    %22 = vector.extract_strided_slice %20 {offsets = [0, 0], sizes = [8, 32], strides = [1, 1]} : vector<8x128xf32> to vector<8x32xf32>
    %23 = vector.extract_strided_slice %20 {offsets = [0, 32], sizes = [8, 32], strides = [1, 1]} : vector<8x128xf32> to vector<8x32xf32>
    %24 = vector.extract_strided_slice %20 {offsets = [0, 64], sizes = [8, 32], strides = [1, 1]} : vector<8x128xf32> to vector<8x32xf32>
    %25 = vector.extract_strided_slice %21 {offsets = [0, 96], sizes = [8, 32], strides = [1, 1]} : vector<8x128xf32> to vector<8x32xf32>
    %26 = arith.mulf %23, %12 : vector<8x32xf32>
    %27 = arith.mulf %22, %25 : vector<8x32xf32>
    %28 = arith.addf %26, %27 : vector<8x32xf32>
    %29 = math.tanh %28 : vector<8x32xf32>
    %30 = arith.mulf %24, %29 : vector<8x32xf32>
    %c0_14 = arith.constant 0 : index
    %c0_15 = arith.constant 0 : index
    %31 = vector.load %arg5[%c0_14, %c0_15] : memref<64x32xf32, #tpu.memory_space<vmem>>, vector<8x32xf32>
    tpu.vector_store %arg5[%c0_14, %c0_15], %30 {strides = array<i32>} : memref<64x32xf32, #tpu.memory_space<vmem>>, vector<8x32xf32>,
    %32 = vector.extract_strided_slice %8 {offsets = [8, 0], sizes = [8, 128], strides = [1, 1]} : vector<64x128xf32> to vector<8x128xf32>
    %cst_16 = arith.constant dense<0.000000e+00> : vector<8x128xf32>
    %33 = tpu.matmul %30, %1, %cst_16 {dimension_numbers = #tpu.dot_dimension_numbers<[1], [0], [0], [1], [0, 0, 1, 1], [], []>} : vector<8x32xf32>, vector<32x128xf32>, vector<8x128xf32> -> vector<8x128xf32>
    %34 = arith.addf %32, %33 : vector<8x128xf32>
    %35 = arith.negf %34 : vector<8x128xf32>
    %36 = math.exp %35 : vector<8x128xf32>
    %cst_17 = arith.constant 1.000000e+00 : f32
    %37 = vector.broadcast %cst_17 : f32 to vector<8x128xf32>
    %38 = arith.addf %37, %36 : vector<8x128xf32>
    %39 = arith.divf %37, %38 : vector<8x128xf32>
    %40 = math.tanh %34 : vector<8x128xf32>
    %41 = vector.extract_strided_slice %39 {offsets = [0, 0], sizes = [8, 32], strides = [1, 1]} : vector<8x128xf32> to vector<8x32xf32>
    %42 = vector.extract_strided_slice %39 {offsets = [0, 32], sizes = [8, 32], strides = [1, 1]} : vector<8x128xf32> to vector<8x32xf32>
    %43 = vector.extract_strided_slice %39 {offsets = [0, 64], sizes = [8, 32], strides = [1, 1]} : vector<8x128xf32> to vector<8x32xf32>
    %44 = vector.extract_strided_slice %40 {offsets = [0, 96], sizes = [8, 32], strides = [1, 1]} : vector<8x128xf32> to vector<8x32xf32>
    %45 = arith.mulf %42, %28 : vector<8x32xf32>
    %46 = arith.mulf %41, %44 : vector<8x32xf32>
    %47 = arith.addf %45, %46 : vector<8x32xf32>
    %48 = math.tanh %47 : vector<8x32xf32>
    %49 = arith.mulf %43, %48 : vector<8x32xf32>
    %c8_18 = arith.constant 8 : index
    %c0_19 = arith.constant 0 : index
    %50 = vector.load %arg5[%c8_18, %c0_19] : memref<64x32xf32, #tpu.memory_space<vmem>>, vector<8x32xf32>
    tpu.vector_store %arg5[%c8_18, %c0_19], %49 {strides = array<i32>} : memref<64x32xf32, #tpu.memory_space<vmem>>, vector<8x32xf32>,
    %51 = vector.extract_strided_slice %8 {offsets = [16, 0], sizes = [8, 128], strides = [1, 1]} : vector<64x128xf32> to vector<8x128xf32>
    %cst_20 = arith.constant dense<0.000000e+00> : vector<8x128xf32>
    %52 = tpu.matmul %49, %1, %cst_20 {dimension_numbers = #tpu.dot_dimension_numbers<[1], [0], [0], [1], [0, 0, 1, 1], [], []>} : vector<8x32xf32>, vector<32x128xf32>, vector<8x128xf32> -> vector<8x128xf32>
    %53 = arith.addf %51, %52 : vector<8x128xf32>
    %54 = arith.negf %53 : vector<8x128xf32>
    %55 = math.exp %54 : vector<8x128xf32>
    %cst_21 = arith.constant 1.000000e+00 : f32
    %56 = vector.broadcast %cst_21 : f32 to vector<8x128xf32>
    %57 = arith.addf %56, %55 : vector<8x128xf32>
    %58 = arith.divf %56, %57 : vector<8x128xf32>
    %59 = math.tanh %53 : vector<8x128xf32>
    %60 = vector.extract_strided_slice %58 {offsets = [0, 0], sizes = [8, 32], strides = [1, 1]} : vector<8x128xf32> to vector<8x32xf32>
    %61 = vector.extract_strided_slice %58 {offsets = [0, 32], sizes = [8, 32], strides = [1, 1]} : vector<8x128xf32> to vector<8x32xf32>
    %62 = vector.extract_strided_slice %58 {offsets = [0, 64], sizes = [8, 32], strides = [1, 1]} : vector<8x128xf32> to vector<8x32xf32>
    %63 = vector.extract_strided_slice %59 {offsets = [0, 96], sizes = [8, 32], strides = [1, 1]} : vector<8x128xf32> to vector<8x32xf32>
    %64 = arith.mulf %61, %47 : vector<8x32xf32>
    %65 = arith.mulf %60, %63 : vector<8x32xf32>
    %66 = arith.addf %64, %65 : vector<8x32xf32>
    %67 = math.tanh %66 : vector<8x32xf32>
    %68 = arith.mulf %62, %67 : vector<8x32xf32>
    %c16 = arith.constant 16 : index
    %c0_22 = arith.constant 0 : index
    %69 = vector.load %arg5[%c16, %c0_22] : memref<64x32xf32, #tpu.memory_space<vmem>>, vector<8x32xf32>
    tpu.vector_store %arg5[%c16, %c0_22], %68 {strides = array<i32>} : memref<64x32xf32, #tpu.memory_space<vmem>>, vector<8x32xf32>,
    %70 = vector.extract_strided_slice %8 {offsets = [24, 0], sizes = [8, 128], strides = [1, 1]} : vector<64x128xf32> to vector<8x128xf32>
    %cst_23 = arith.constant dense<0.000000e+00> : vector<8x128xf32>
    %71 = tpu.matmul %68, %1, %cst_23 {dimension_numbers = #tpu.dot_dimension_numbers<[1], [0], [0], [1], [0, 0, 1, 1], [], []>} : vector<8x32xf32>, vector<32x128xf32>, vector<8x128xf32> -> vector<8x128xf32>
    %72 = arith.addf %70, %71 : vector<8x128xf32>
    %73 = arith.negf %72 : vector<8x128xf32>
    %74 = math.exp %73 : vector<8x128xf32>
    %cst_24 = arith.constant 1.000000e+00 : f32
    %75 = vector.broadcast %cst_24 : f32 to vector<8x128xf32>
    %76 = arith.addf %75, %74 : vector<8x128xf32>
    %77 = arith.divf %75, %76 : vector<8x128xf32>
    %78 = math.tanh %72 : vector<8x128xf32>
    %79 = vector.extract_strided_slice %77 {offsets = [0, 0], sizes = [8, 32], strides = [1, 1]} : vector<8x128xf32> to vector<8x32xf32>
    %80 = vector.extract_strided_slice %77 {offsets = [0, 32], sizes = [8, 32], strides = [1, 1]} : vector<8x128xf32> to vector<8x32xf32>
    %81 = vector.extract_strided_slice %77 {offsets = [0, 64], sizes = [8, 32], strides = [1, 1]} : vector<8x128xf32> to vector<8x32xf32>
    %82 = vector.extract_strided_slice %78 {offsets = [0, 96], sizes = [8, 32], strides = [1, 1]} : vector<8x128xf32> to vector<8x32xf32>
    %83 = arith.mulf %80, %66 : vector<8x32xf32>
    %84 = arith.mulf %79, %82 : vector<8x32xf32>
    %85 = arith.addf %83, %84 : vector<8x32xf32>
    %86 = math.tanh %85 : vector<8x32xf32>
    %87 = arith.mulf %81, %86 : vector<8x32xf32>
    %c24 = arith.constant 24 : index
    %c0_25 = arith.constant 0 : index
    %88 = vector.load %arg5[%c24, %c0_25] : memref<64x32xf32, #tpu.memory_space<vmem>>, vector<8x32xf32>
    tpu.vector_store %arg5[%c24, %c0_25], %87 {strides = array<i32>} : memref<64x32xf32, #tpu.memory_space<vmem>>, vector<8x32xf32>,
    %89 = vector.extract_strided_slice %8 {offsets = [32, 0], sizes = [8, 128], strides = [1, 1]} : vector<64x128xf32> to vector<8x128xf32>
    %cst_26 = arith.constant dense<0.000000e+00> : vector<8x128xf32>
    %90 = tpu.matmul %87, %1, %cst_26 {dimension_numbers = #tpu.dot_dimension_numbers<[1], [0], [0], [1], [0, 0, 1, 1], [], []>} : vector<8x32xf32>, vector<32x128xf32>, vector<8x128xf32> -> vector<8x128xf32>
    %91 = arith.addf %89, %90 : vector<8x128xf32>
    %92 = arith.negf %91 : vector<8x128xf32>
    %93 = math.exp %92 : vector<8x128xf32>
    %cst_27 = arith.constant 1.000000e+00 : f32
    %94 = vector.broadcast %cst_27 : f32 to vector<8x128xf32>
    %95 = arith.addf %94, %93 : vector<8x128xf32>
    %96 = arith.divf %94, %95 : vector<8x128xf32>
    %97 = math.tanh %91 : vector<8x128xf32>
    %98 = vector.extract_strided_slice %96 {offsets = [0, 0], sizes = [8, 32], strides = [1, 1]} : vector<8x128xf32> to vector<8x32xf32>
    %99 = vector.extract_strided_slice %96 {offsets = [0, 32], sizes = [8, 32], strides = [1, 1]} : vector<8x128xf32> to vector<8x32xf32>
    %100 = vector.extract_strided_slice %96 {offsets = [0, 64], sizes = [8, 32], strides = [1, 1]} : vector<8x128xf32> to vector<8x32xf32>
    %101 = vector.extract_strided_slice %97 {offsets = [0, 96], sizes = [8, 32], strides = [1, 1]} : vector<8x128xf32> to vector<8x32xf32>
    %102 = arith.mulf %99, %85 : vector<8x32xf32>
    %103 = arith.mulf %98, %101 : vector<8x32xf32>
    %104 = arith.addf %102, %103 : vector<8x32xf32>
    %105 = math.tanh %104 : vector<8x32xf32>
    %106 = arith.mulf %100, %105 : vector<8x32xf32>
    %c32 = arith.constant 32 : index
    %c0_28 = arith.constant 0 : index
    %107 = vector.load %arg5[%c32, %c0_28] : memref<64x32xf32, #tpu.memory_space<vmem>>, vector<8x32xf32>
    tpu.vector_store %arg5[%c32, %c0_28], %106 {strides = array<i32>} : memref<64x32xf32, #tpu.memory_space<vmem>>, vector<8x32xf32>,
    %108 = vector.extract_strided_slice %8 {offsets = [40, 0], sizes = [8, 128], strides = [1, 1]} : vector<64x128xf32> to vector<8x128xf32>
    %cst_29 = arith.constant dense<0.000000e+00> : vector<8x128xf32>
    %109 = tpu.matmul %106, %1, %cst_29 {dimension_numbers = #tpu.dot_dimension_numbers<[1], [0], [0], [1], [0, 0, 1, 1], [], []>} : vector<8x32xf32>, vector<32x128xf32>, vector<8x128xf32> -> vector<8x128xf32>
    %110 = arith.addf %108, %109 : vector<8x128xf32>
    %111 = arith.negf %110 : vector<8x128xf32>
    %112 = math.exp %111 : vector<8x128xf32>
    %cst_30 = arith.constant 1.000000e+00 : f32
    %113 = vector.broadcast %cst_30 : f32 to vector<8x128xf32>
    %114 = arith.addf %113, %112 : vector<8x128xf32>
    %115 = arith.divf %113, %114 : vector<8x128xf32>
    %116 = math.tanh %110 : vector<8x128xf32>
    %117 = vector.extract_strided_slice %115 {offsets = [0, 0], sizes = [8, 32], strides = [1, 1]} : vector<8x128xf32> to vector<8x32xf32>
    %118 = vector.extract_strided_slice %115 {offsets = [0, 32], sizes = [8, 32], strides = [1, 1]} : vector<8x128xf32> to vector<8x32xf32>
    %119 = vector.extract_strided_slice %115 {offsets = [0, 64], sizes = [8, 32], strides = [1, 1]} : vector<8x128xf32> to vector<8x32xf32>
    %120 = vector.extract_strided_slice %116 {offsets = [0, 96], sizes = [8, 32], strides = [1, 1]} : vector<8x128xf32> to vector<8x32xf32>
    %121 = arith.mulf %118, %104 : vector<8x32xf32>
    %122 = arith.mulf %117, %120 : vector<8x32xf32>
    %123 = arith.addf %121, %122 : vector<8x32xf32>
    %124 = math.tanh %123 : vector<8x32xf32>
    %125 = arith.mulf %119, %124 : vector<8x32xf32>
    %c40_31 = arith.constant 40 : index
    %c0_32 = arith.constant 0 : index
    %126 = vector.load %arg5[%c40_31, %c0_32] : memref<64x32xf32, #tpu.memory_space<vmem>>, vector<8x32xf32>
    tpu.vector_store %arg5[%c40_31, %c0_32], %125 {strides = array<i32>} : memref<64x32xf32, #tpu.memory_space<vmem>>, vector<8x32xf32>,
    %127 = vector.extract_strided_slice %8 {offsets = [48, 0], sizes = [8, 128], strides = [1, 1]} : vector<64x128xf32> to vector<8x128xf32>
    %cst_33 = arith.constant dense<0.000000e+00> : vector<8x128xf32>
    %128 = tpu.matmul %125, %1, %cst_33 {dimension_numbers = #tpu.dot_dimension_numbers<[1], [0], [0], [1], [0, 0, 1, 1], [], []>} : vector<8x32xf32>, vector<32x128xf32>, vector<8x128xf32> -> vector<8x128xf32>
    %129 = arith.addf %127, %128 : vector<8x128xf32>
    %130 = arith.negf %129 : vector<8x128xf32>
    %131 = math.exp %130 : vector<8x128xf32>
    %cst_34 = arith.constant 1.000000e+00 : f32
    %132 = vector.broadcast %cst_34 : f32 to vector<8x128xf32>
    %133 = arith.addf %132, %131 : vector<8x128xf32>
    %134 = arith.divf %132, %133 : vector<8x128xf32>
    %135 = math.tanh %129 : vector<8x128xf32>
    %136 = vector.extract_strided_slice %134 {offsets = [0, 0], sizes = [8, 32], strides = [1, 1]} : vector<8x128xf32> to vector<8x32xf32>
    %137 = vector.extract_strided_slice %134 {offsets = [0, 32], sizes = [8, 32], strides = [1, 1]} : vector<8x128xf32> to vector<8x32xf32>
    %138 = vector.extract_strided_slice %134 {offsets = [0, 64], sizes = [8, 32], strides = [1, 1]} : vector<8x128xf32> to vector<8x32xf32>
    %139 = vector.extract_strided_slice %135 {offsets = [0, 96], sizes = [8, 32], strides = [1, 1]} : vector<8x128xf32> to vector<8x32xf32>
    %140 = arith.mulf %137, %123 : vector<8x32xf32>
    %141 = arith.mulf %136, %139 : vector<8x32xf32>
    %142 = arith.addf %140, %141 : vector<8x32xf32>
    %143 = math.tanh %142 : vector<8x32xf32>
    %144 = arith.mulf %138, %143 : vector<8x32xf32>
    %c48_35 = arith.constant 48 : index
    %c0_36 = arith.constant 0 : index
    %145 = vector.load %arg5[%c48_35, %c0_36] : memref<64x32xf32, #tpu.memory_space<vmem>>, vector<8x32xf32>
    tpu.vector_store %arg5[%c48_35, %c0_36], %144 {strides = array<i32>} : memref<64x32xf32, #tpu.memory_space<vmem>>, vector<8x32xf32>,
    %146 = vector.extract_strided_slice %8 {offsets = [56, 0], sizes = [8, 128], strides = [1, 1]} : vector<64x128xf32> to vector<8x128xf32>
    %cst_37 = arith.constant dense<0.000000e+00> : vector<8x128xf32>
    %147 = tpu.matmul %144, %1, %cst_37 {dimension_numbers = #tpu.dot_dimension_numbers<[1], [0], [0], [1], [0, 0, 1, 1], [], []>} : vector<8x32xf32>, vector<32x128xf32>, vector<8x128xf32> -> vector<8x128xf32>
    %148 = arith.addf %146, %147 : vector<8x128xf32>
    %149 = arith.negf %148 : vector<8x128xf32>
    %150 = math.exp %149 : vector<8x128xf32>
    %cst_38 = arith.constant 1.000000e+00 : f32
    %151 = vector.broadcast %cst_38 : f32 to vector<8x128xf32>
    %152 = arith.addf %151, %150 : vector<8x128xf32>
    %153 = arith.divf %151, %152 : vector<8x128xf32>
    %154 = math.tanh %148 : vector<8x128xf32>
    %155 = vector.extract_strided_slice %153 {offsets = [0, 0], sizes = [8, 32], strides = [1, 1]} : vector<8x128xf32> to vector<8x32xf32>
    %156 = vector.extract_strided_slice %153 {offsets = [0, 32], sizes = [8, 32], strides = [1, 1]} : vector<8x128xf32> to vector<8x32xf32>
    %157 = vector.extract_strided_slice %153 {offsets = [0, 64], sizes = [8, 32], strides = [1, 1]} : vector<8x128xf32> to vector<8x32xf32>
    %158 = vector.extract_strided_slice %154 {offsets = [0, 96], sizes = [8, 32], strides = [1, 1]} : vector<8x128xf32> to vector<8x32xf32>
    %159 = arith.mulf %156, %142 : vector<8x32xf32>
    %160 = arith.mulf %155, %158 : vector<8x32xf32>
    %161 = arith.addf %159, %160 : vector<8x32xf32>
    %162 = math.tanh %161 : vector<8x32xf32>
    %163 = arith.mulf %157, %162 : vector<8x32xf32>
    %c56 = arith.constant 56 : index
    %c0_39 = arith.constant 0 : index
    %164 = vector.load %arg5[%c56, %c0_39] : memref<64x32xf32, #tpu.memory_space<vmem>>, vector<8x32xf32>
    tpu.vector_store %arg5[%c56, %c0_39], %163 {strides = array<i32>} : memref<64x32xf32, #tpu.memory_space<vmem>>, vector<8x32xf32>,
    %c0_40 = arith.constant 0 : index
    %c0_41 = arith.constant 0 : index
    %c0_42 = arith.constant 0 : index
    %165 = vector.load %arg4[%c0_40, %c0_41, %c0_42] : memref<2x8x32xf32, #tpu.memory_space<vmem>>, vector<1x8x32xf32>
    %166 = vector.shape_cast %165 : vector<1x8x32xf32> to vector<8x32xf32>
    %167 = vector.shape_cast %163 : vector<8x32xf32> to vector<1x8x32xf32>
    tpu.vector_store %arg4[%c0_40, %c0_41, %c0_42], %167 {strides = array<i32>} : memref<2x8x32xf32, #tpu.memory_space<vmem>>, vector<1x8x32xf32>,
    %c1_43 = arith.constant 1 : index
    %c0_44 = arith.constant 0 : index
    %c0_45 = arith.constant 0 : index
    %168 = vector.load %arg4[%c1_43, %c0_44, %c0_45] : memref<2x8x32xf32, #tpu.memory_space<vmem>>, vector<1x8x32xf32>
    %169 = vector.shape_cast %168 : vector<1x8x32xf32> to vector<8x32xf32>
    %170 = vector.shape_cast %161 : vector<8x32xf32> to vector<1x8x32xf32>
    tpu.vector_store %arg4[%c1_43, %c0_44, %c0_45], %170 {strides = array<i32>} : memref<2x8x32xf32, #tpu.memory_space<vmem>>, vector<1x8x32xf32>,
    %c0_46 = arith.constant 0 : index
    %c0_47 = arith.constant 0 : index
    %171 = vector.load %arg5[%c0_46, %c0_47] : memref<64x32xf32, #tpu.memory_space<vmem>>, vector<64x32xf32>
    %cst_48 = arith.constant dense<0.000000e+00> : vector<64x128xf32>
    %172 = tpu.matmul %171, %3, %cst_48 {dimension_numbers = #tpu.dot_dimension_numbers<[1], [0], [0], [1], [0, 0, 1, 1], [], []>} : vector<64x32xf32>, vector<32x128xf32>, vector<64x128xf32> -> vector<64x128xf32>
    %173 = vector.broadcast %4 : vector<1x128xf32> to vector<64x128xf32>
    %174 = arith.addf %172, %173 : vector<64x128xf32>
    %cst_49 = arith.constant dense<0xFF800000> : vector<64xf32>
    %175 = vector.multi_reduction <maximumf>, %174, %cst_49 [1] : vector<64x128xf32> to vector<64xf32>
    %176 = vector.shape_cast %175 : vector<64xf32> to vector<64x1xf32>
    %177 = vector.broadcast %176 : vector<64x1xf32> to vector<64x128xf32>
    %178 = arith.subf %174, %177 : vector<64x128xf32>
    %179 = math.exp %178 : vector<64x128xf32>
    %cst_50 = arith.constant dense<0.000000e+00> : vector<64xf32>
    %180 = vector.multi_reduction <add>, %179, %cst_50 [1] : vector<64x128xf32> to vector<64xf32>
    %181 = vector.shape_cast %180 : vector<64xf32> to vector<64x1xf32>
    %182 = math.log %181 : vector<64x1xf32>
    %183 = vector.broadcast %182 : vector<64x1xf32> to vector<64x128xf32>
    %184 = arith.subf %178, %183 : vector<64x128xf32>
    %c0_51 = arith.constant 0 : index
    %c0_52 = arith.constant 0 : index
    %185 = vector.load %arg3[%c0_51, %c0_52] : memref<64x128xf32, #tpu.memory_space<vmem>>, vector<64x128xf32>
    tpu.vector_store %arg3[%c0_51, %c0_52], %184 {strides = array<i32>} : memref<64x128xf32, #tpu.memory_space<vmem>>, vector<64x128xf32>,
    return
  }
}

</mosaic_0001>

<llo_original>
// kernel: single_lstm_forward.1
$region0: #{single_lstm_forward.1}
  #allocation0 [shape = 'u32[]', space=smem, size = 0x4, offset = 0x4, fixed_abs, tag = 'smem constant byte address 0x4 - core index']
  #allocation1 [shape = 'u32[144,128]{1,0:T(1,128)}', space=vmem, size = 0x12000, scoped, tag = 'internal scratch']
  #allocation2 [shape = 'f32[64,32]{1,0:T(8,128)}', space=vmem, size = 0x8000, scoped, tag = 'scratch operand']
  %s0 = inlined_call_operand.vmem [shape: f32[64,4], index: 0, kind: input, shape index: {}]
  %s1 = inlined_call_operand.vmem [shape: f32[2,8,32], index: 1, kind: input, shape index: {}]
  %s2 = inlined_call_operand.vmem [shape: f32[88,128], index: 2, kind: input, shape index: {}]
  %s3 = inlined_call_operand.vmem [shape: f32[64,128], index: 3, kind: output, shape index: {0}]
  %s4 = inlined_call_operand.vmem [shape: f32[2,8,32], index: 4, kind: output, shape index: {1}]
  %5 = xla_tuple %s3, %s4
  %s6 = sld [smem:[#allocation0]]
  $region30: #{single_lstm_forward.1} parent=0
    _
  %s8 = ssub.s32 1, %s6
  %s9 = scalar_select 0, %s8, %s6
  // Predicated region
  $region2: #{single_lstm_forward.1} parent=0 // pred_check
    _
  $region3: #{single_lstm_forward.1} parent=0 // pred_check_branch
    %11 = sbr.rel (0) target = $region5
  $region4: #{single_lstm_forward.1} parent=0 // pred_region
    _
  $region5: #{single_lstm_forward.1} parent=0 // pred_fallthru
    _
  // Predicated region
  $region6: #{single_lstm_forward.1} parent=0 // pred_check
    _
  $region7: #{single_lstm_forward.1} parent=0 // pred_check_branch
    %13 = sbr.rel (0) target = $region9
  $region8: #{single_lstm_forward.1} parent=0 // pred_region
    _
  $region9: #{single_lstm_forward.1} parent=0 // pred_fallthru
    _
  // Predicated region
  $region10: #{single_lstm_forward.1} parent=0 // pred_check
    _
  $region11: #{single_lstm_forward.1} parent=0 // pred_check_branch
    %15 = sbr.rel (0) target = $region13
  $region12: #{single_lstm_forward.1} parent=0 // pred_region
    _
  $region13: #{single_lstm_forward.1} parent=0 // pred_fallthru
    _
  %v16 = vld [vmem:[%s2] sm:$0xf]
  %v17 = vld [vmem:[%s2 + $0x8] sm:$0xff]
  %v18 = vld [vmem:[%s2 + $0x10] sm:$0xff]
  %v19 = vld [vmem:[%s2 + $0x18] sm:$0xff]
  %v20 = vld [vmem:[%s2 + $0x20] sm:$0xff]
  %v21 = vld [vmem:[%s2 + $0x28] sm:$0x1]
  %v22 = vld [vmem:[%s2 + $0x30] sm:$0xff]
  %v23 = vld [vmem:[%s2 + $0x38] sm:$0xff]
  %v24 = vld [vmem:[%s2 + $0x40] sm:$0xff]
  %v25 = vld [vmem:[%s2 + $0x48] sm:$0xff]
  %v26 = vld [vmem:[%s2 + $0x50] sm:$0x1]
  %v27 = vld [vmem:[%s0] sm:$0xff]
  %v28 = vld [vmem:[%s0 + $0x8] sm:$0xff]
  %v29 = vld [vmem:[%s0 + $0x10] sm:$0xff]
  %v30 = vld [vmem:[%s0 + $0x18] sm:$0xff]
  %v31 = vld [vmem:[%s0 + $0x20] sm:$0xff]
  %v32 = vld [vmem:[%s0 + $0x28] sm:$0xff]
  %v33 = vld [vmem:[%s0 + $0x30] sm:$0xff]
  %v34 = vld [vmem:[%s0 + $0x38] sm:$0xff]
  %v35 = vlaneseq
  %v36 = vshrl.u32 %v35, 7
  %v37 = vsub.s32 0, %v36
  %v38 = vrot.slane %v21, %v37
  %vm39 = vcmask 31744
  %v41 = vsel %vm39, %v27, 0
  %v44 = vsel %vm39, %v28, 0
  %v47 = vsel %vm39, %v29, 0
  %v50 = vsel %vm39, %v30, 0
  %v53 = vsel %vm39, %v31, 0
  %v56 = vsel %vm39, %v32, 0
  %v59 = vsel %vm39, %v33, 0
  %v62 = vsel %vm39, %v34, 0
  %vm64 = vcmask 1043456
  %v66 = vsel %vm64, %v16, 0
  %68 = vmatprep.subr.mxu0 0.0
  %69 = vmatpush1.msra.mxu0 %v66
  %70 = vmatprep.subr.mxu0 0.0
  %71 = vmatpush1.msra.mxu0 0.0
  %72 = vmatprep.subr.mxu0 0.0
  %73 = vmatpush1.msra.mxu0 0.0
  %74 = vmatprep.subr.mxu0 0.0
  %75 = vmatpush1.msra.mxu0 0.0
  %76 = vmatprep.subr.mxu0 0.0
  %77 = vmatpush1.msra.mxu0 0.0
  %78 = vmatprep.subr.mxu0 0.0
  %79 = vmatpush1.msra.mxu0 0.0
  %80 = vmatprep.subr.mxu0 0.0
  %81 = vmatpush1.msra.mxu0 0.0
  %82 = vmatprep.subr.mxu0 0.0
  %83 = vmatpush1.msra.mxu0 0.0
  %84 = vmatprep.subr.mxu0 0.0
  %85 = vmatpush1.msra.mxu0 0.0
  %86 = vmatprep.subr.mxu0 0.0
  %87 = vmatpush1.msra.mxu0 0.0
  %88 = vmatprep.subr.mxu0 0.0
  %89 = vmatpush1.msra.mxu0 0.0
  %90 = vmatprep.subr.mxu0 0.0
  %91 = vmatpush1.msra.mxu0 0.0
  %92 = vmatprep.subr.mxu0 0.0
  %93 = vmatpush1.msra.mxu0 0.0
  %94 = vmatprep.subr.mxu0 0.0
  %95 = vmatpush1.msra.mxu0 0.0
  %96 = vmatprep.subr.mxu0 0.0
  %97 = vmatpush1.msra.mxu0 0.0
  %98 = vmatprep.subr.mxu0 0.0
  %99 = vmatpush1.msra.mxu0 0.0
  %100 = vmatprep.subr.mxu0 0.0
  %101 = vmatpush1.msra.mxu0 0.0
  %102 = vmatprep.subr.mxu0 0.0
  %103 = vmatpush1.msra.mxu0 0.0
  %104 = vmatprep.subr.mxu0 0.0
  %105 = vmatpush1.msra.mxu0 0.0
  %106 = vmatprep.subr.mxu0 0.0
  %107 = vmatpush1.msra.mxu0 0.0
  %108 = vmatprep.subr.mxu0 0.0
  %109 = vmatpush1.msra.mxu0 0.0
  %110 = vmatprep.subr.mxu0 0.0
  %111 = vmatpush1.msra.mxu0 0.0
  %112 = vmatprep.subr.mxu0 0.0
  %113 = vmatpush1.msra.mxu0 0.0
  %114 = vmatprep.subr.mxu0 0.0
  %115 = vmatpush1.msra.mxu0 0.0
  %116 = vmatprep.subr.mxu0 0.0
  %117 = vmatpush1.msra.mxu0 0.0
  %118 = vmatprep.subr.mxu0 0.0
  %119 = vmatpush1.msra.mxu0 0.0
  %120 = vmatprep.subr.mxu0 0.0
  %121 = vmatpush1.msra.mxu0 0.0
  %122 = vmatprep.subr.mxu0 0.0
  %123 = vmatpush1.msra.mxu0 0.0
  %124 = vmatprep.subr.mxu0 0.0
  %125 = vmatpush1.msra.mxu0 0.0
  %126 = vmatprep.subr.mxu0 0.0
  %127 = vmatpush1.msra.mxu0 0.0
  %128 = vmatprep.subr.mxu0 0.0
  %129 = vmatpush1.msra.mxu0 0.0
  %130 = vmatprep.subr.mxu0 0.0
  %131 = vmatpush1.msra.mxu0 0.0
  %132 = vmatprep.mubr.f32.mxu0 0.0
  %133 = vmatmul.mubr.f32.gmra.mrb[0].mxu0 %v41
  %v134 = vpop.f32.mrb[0].mxu0
  %v135 = vadd.f32 %v38, %v134
  %v136 = vpop.f32.mrb[0].mxu0
  %137 = vmatprep.mubr.f32.mxu0 0.0
  %138 = vmatmul.mubr.f32.gmra.mrb[0].mxu0 %v44
  %v139 = vpop.f32.mrb[0].mxu0
  %v140 = vadd.f32 %v38, %v139
  %v141 = vpop.f32.mrb[0].mxu0
  %142 = vmatprep.mubr.f32.mxu0 0.0
  %143 = vmatmul.mubr.f32.gmra.mrb[0].mxu0 %v47
  %v144 = vpop.f32.mrb[0].mxu0
  %v145 = vadd.f32 %v38, %v144
  %v146 = vpop.f32.mrb[0].mxu0
  %147 = vmatprep.mubr.f32.mxu0 0.0
  %148 = vmatmul.mubr.f32.gmra.mrb[0].mxu0 %v50
  %v149 = vpop.f32.mrb[0].mxu0
  %v150 = vadd.f32 %v38, %v149
  %v151 = vpop.f32.mrb[0].mxu0
  %152 = vmatprep.mubr.f32.mxu0 0.0
  %153 = vmatmul.mubr.f32.gmra.mrb[0].mxu0 %v53
  %v154 = vpop.f32.mrb[0].mxu0
  %v155 = vadd.f32 %v38, %v154
  %v156 = vpop.f32.mrb[0].mxu0
  %157 = vmatprep.mubr.f32.mxu0 0.0
  %158 = vmatmul.mubr.f32.gmra.mrb[0].mxu0 %v56
  %v159 = vpop.f32.mrb[0].mxu0
  %v160 = vadd.f32 %v38, %v159
  %v161 = vpop.f32.mrb[0].mxu0
  %162 = vmatprep.mubr.f32.mxu0 0.0
  %163 = vmatmul.mubr.f32.gmra.mrb[0].mxu0 %v59
  %v164 = vpop.f32.mrb[0].mxu0
  %v165 = vadd.f32 %v38, %v164
  %v166 = vpop.f32.mrb[0].mxu0
  %167 = vmatprep.mubr.f32.mxu0 0.0
  %168 = vmatmul.mubr.f32.gmra.mrb[0].mxu0 %v62
  %v169 = vpop.f32.mrb[0].mxu0
  %v170 = vadd.f32 %v38, %v169
  %v171 = vpop.f32.mrb[0].mxu0
  %172 = vdwg.mxu0
  %v173 = vld [vmem:[%s1] sm:$0xff]
  %s174 = scalar_lea.vmem %s1, 8
  %v175 = vld [vmem:[%s174] sm:$0xff]
  %vm176 = vcmask 261120
  %v178 = vsel %vm176, %v173, 0
  %180 = vmatprep.subr.mxu0 0.0
  %181 = vmatpush1.msra.mxu0 %v17
  %182 = vmatprep.subr.mxu0 0.0
  %183 = vmatpush1.msra.mxu0 %v18
  %184 = vmatprep.subr.mxu0 0.0
  %185 = vmatpush1.msra.mxu0 %v19
  %186 = vmatprep.subr.mxu0 0.0
  %187 = vmatpush1.msra.mxu0 %v20
  %188 = vmatprep.subr.mxu0 0.0
  %189 = vmatpush1.msra.mxu0 0.0
  %190 = vmatprep.subr.mxu0 0.0
  %191 = vmatpush1.msra.mxu0 0.0
  %192 = vmatprep.subr.mxu0 0.0
  %193 = vmatpush1.msra.mxu0 0.0
  %194 = vmatprep.subr.mxu0 0.0
  %195 = vmatpush1.msra.mxu0 0.0
  %196 = vmatprep.subr.mxu0 0.0
  %197 = vmatpush1.msra.mxu0 0.0
  %198 = vmatprep.subr.mxu0 0.0
  %199 = vmatpush1.msra.mxu0 0.0
  %200 = vmatprep.subr.mxu0 0.0
  %201 = vmatpush1.msra.mxu0 0.0
  %202 = vmatprep.subr.mxu0 0.0
  %203 = vmatpush1.msra.mxu0 0.0
  %204 = vmatprep.subr.mxu0 0.0
  %205 = vmatpush1.msra.mxu0 0.0
  %206 = vmatprep.subr.mxu0 0.0
  %207 = vmatpush1.msra.mxu0 0.0
  %208 = vmatprep.subr.mxu0 0.0
  %209 = vmatpush1.msra.mxu0 0.0
  %210 = vmatprep.subr.mxu0 0.0
  %211 = vmatpush1.msra.mxu0 0.0
  %212 = vmatprep.subr.mxu0 0.0
  %213 = vmatpush1.msra.mxu0 0.0
  %214 = vmatprep.subr.mxu0 0.0
  %215 = vmatpush1.msra.mxu0 0.0
  %216 = vmatprep.subr.mxu0 0.0
  %217 = vmatpush1.msra.mxu0 0.0
  %218 = vmatprep.subr.mxu0 0.0
  %219 = vmatpush1.msra.mxu0 0.0
  %220 = vmatprep.subr.mxu0 0.0
  %221 = vmatpush1.msra.mxu0 0.0
  %222 = vmatprep.subr.mxu0 0.0
  %223 = vmatpush1.msra.mxu0 0.0
  %224 = vmatprep.subr.mxu0 0.0
  %225 = vmatpush1.msra.mxu0 0.0
  %226 = vmatprep.subr.mxu0 0.0
  %227 = vmatpush1.msra.mxu0 0.0
  %228 = vmatprep.subr.mxu0 0.0
  %229 = vmatpush1.msra.mxu0 0.0
  %230 = vmatprep.subr.mxu0 0.0
  %231 = vmatpush1.msra.mxu0 0.0
  %232 = vmatprep.subr.mxu0 0.0
  %233 = vmatpush1.msra.mxu0 0.0
  %234 = vmatprep.subr.mxu0 0.0
  %235 = vmatpush1.msra.mxu0 0.0
  %236 = vmatprep.subr.mxu0 0.0
  %237 = vmatpush1.msra.mxu0 0.0
  %238 = vmatprep.subr.mxu0 0.0
  %239 = vmatpush1.msra.mxu0 0.0
  %240 = vmatprep.subr.mxu0 0.0
  %241 = vmatpush1.msra.mxu0 0.0
  %242 = vmatprep.subr.mxu0 0.0
  %243 = vmatpush1.msra.mxu0 0.0
  %244 = vmatprep.mubr.f32.mxu0 0.0
  %245 = vmatmul.mubr.f32.gmra.mrb[0].mxu0 %v178
  %v246 = vpop.f32.mrb[0].mxu0
  %v247 = vadd.f32 0.0, %v246
  %v248 = vpop.f32.mrb[0].mxu0
  %249 = vdwg.mxu0
  %v250 = vadd.f32 %v135, %v247
  %v251 = vxor.u32 %v250, 2147483648
  %v252 = vmul.f32 %v251, 1.442695
  %v253 = vpow.pop %v252
  %v254 = vadd.f32 %v253, 1.0
  %v255 = vrcp.pop %v254
  %v256 = vmul.f32 1.0, %v255
  %v257 = vtanh.pop %v250
  %259 = vrot.lane.b32.xlu0 %v175, 32
  %v260 = vpop.permute.xlu0 %259
  %v262 = vmul.f32 %v256, %v260
  %264 = vrot.lane.b32.xlu0 %v257, 32
  %v265 = vpop.permute.xlu0 %264
  %v267 = vmul.f32 %v256, %v265
  %269 = vrot.lane.b32.xlu0 %v267, 32
  %v270 = vpop.permute.xlu0 %269
  %v272 = vadd.f32 %v262, %v270
  %v273 = vtanh.pop %v272
  %275 = vrot.lane.b32.xlu0 %v273, 32
  %v276 = vpop.permute.xlu0 %275
  %v278 = vmul.f32 %v256, %v276
  %280 = vrot.lane.b32.xlu0 %v278, 64
  %v281 = vpop.permute.xlu0 %280
  %283 = vst.msk [vmem:[#allocation2] sm:$0xff] %vm176, %v281
  %v284 = vsel %vm176, %v281, 0
  %286 = vmatprep.subr.mxu0 0.0
  %287 = vmatpush1.msra.mxu0 %v17
  %288 = vmatprep.subr.mxu0 0.0
  %289 = vmatpush1.msra.mxu0 %v18
  %290 = vmatprep.subr.mxu0 0.0
  %291 = vmatpush1.msra.mxu0 %v19
  %292 = vmatprep.subr.mxu0 0.0
  %293 = vmatpush1.msra.mxu0 %v20
  %294 = vmatprep.subr.mxu0 0.0
  %295 = vmatpush1.msra.mxu0 0.0
  %296 = vmatprep.subr.mxu0 0.0
  %297 = vmatpush1.msra.mxu0 0.0
  %298 = vmatprep.subr.mxu0 0.0
  %299 = vmatpush1.msra.mxu0 0.0
  %300 = vmatprep.subr.mxu0 0.0
  %301 = vmatpush1.msra.mxu0 0.0
  %302 = vmatprep.subr.mxu0 0.0
  %303 = vmatpush1.msra.mxu0 0.0
  %304 = vmatprep.subr.mxu0 0.0
  %305 = vmatpush1.msra.mxu0 0.0
  %306 = vmatprep.subr.mxu0 0.0
  %307 = vmatpush1.msra.mxu0 0.0
  %308 = vmatprep.subr.mxu0 0.0
  %309 = vmatpush1.msra.mxu0 0.0
  %310 = vmatprep.subr.mxu0 0.0
  %311 = vmatpush1.msra.mxu0 0.0
  %312 = vmatprep.subr.mxu0 0.0
  %313 = vmatpush1.msra.mxu0 0.0
  %314 = vmatprep.subr.mxu0 0.0
  %315 = vmatpush1.msra.mxu0 0.0
  %316 = vmatprep.subr.mxu0 0.0
  %317 = vmatpush1.msra.mxu0 0.0
  %318 = vmatprep.subr.mxu0 0.0
  %319 = vmatpush1.msra.mxu0 0.0
  %320 = vmatprep.subr.mxu0 0.0
  %321 = vmatpush1.msra.mxu0 0.0
  %322 = vmatprep.subr.mxu0 0.0
  %323 = vmatpush1.msra.mxu0 0.0
  %324 = vmatprep.subr.mxu0 0.0
  %325 = vmatpush1.msra.mxu0 0.0
  %326 = vmatprep.subr.mxu0 0.0
  %327 = vmatpush1.msra.mxu0 0.0
  %328 = vmatprep.subr.mxu0 0.0
  %329 = vmatpush1.msra.mxu0 0.0
  %330 = vmatprep.subr.mxu0 0.0
  %331 = vmatpush1.msra.mxu0 0.0
  %332 = vmatprep.subr.mxu0 0.0
  %333 = vmatpush1.msra.mxu0 0.0
  %334 = vmatprep.subr.mxu0 0.0
  %335 = vmatpush1.msra.mxu0 0.0
  %336 = vmatprep.subr.mxu0 0.0
  %337 = vmatpush1.msra.mxu0 0.0
  %338 = vmatprep.subr.mxu0 0.0
  %339 = vmatpush1.msra.mxu0 0.0
  %340 = vmatprep.subr.mxu0 0.0
  %341 = vmatpush1.msra.mxu0 0.0
  %342 = vmatprep.subr.mxu0 0.0
  %343 = vmatpush1.msra.mxu0 0.0
  %344 = vmatprep.subr.mxu0 0.0
  %345 = vmatpush1.msra.mxu0 0.0
  %346 = vmatprep.subr.mxu0 0.0
  %347 = vmatpush1.msra.mxu0 0.0
  %348 = vmatprep.subr.mxu0 0.0
  %349 = vmatpush1.msra.mxu0 0.0
  %350 = vmatprep.mubr.f32.mxu0 0.0
  %351 = vmatmul.mubr.f32.gmra.mrb[0].mxu0 %v284
  %v352 = vpop.f32.mrb[0].mxu0
  %v353 = vadd.f32 0.0, %v352
  %v354 = vpop.f32.mrb[0].mxu0
  %355 = vdwg.mxu0
  %v356 = vadd.f32 %v140, %v353
  %v357 = vxor.u32 %v356, 2147483648
  %v358 = vmul.f32 %v357, 1.442695
  %v359 = vpow.pop %v358
  %v360 = vadd.f32 %v359, 1.0
  %v361 = vrcp.pop %v360
  %v362 = vmul.f32 1.0, %v361
  %v363 = vtanh.pop %v356
  %v364 = vmul.f32 %v362, %v272
  %366 = vrot.lane.b32.xlu0 %v363, 32
  %v367 = vpop.permute.xlu0 %366
  %v369 = vmul.f32 %v362, %v367
  %371 = vrot.lane.b32.xlu0 %v369, 32
  %v372 = vpop.permute.xlu0 %371
  %v374 = vadd.f32 %v364, %v372
  %v375 = vtanh.pop %v374
  %377 = vrot.lane.b32.xlu0 %v375, 32
  %v378 = vpop.permute.xlu0 %377
  %v380 = vmul.f32 %v362, %v378
  %382 = vrot.lane.b32.xlu0 %v380, 64
  %v383 = vpop.permute.xlu0 %382
  %385 = vst.msk [vmem:[#allocation2 + $0x8] sm:$0xff] %vm176, %v383
  %v386 = vsel %vm176, %v383, 0
  %388 = vmatprep.subr.mxu0 0.0
  %389 = vmatpush1.msra.mxu0 %v17
  %390 = vmatprep.subr.mxu0 0.0
  %391 = vmatpush1.msra.mxu0 %v18
  %392 = vmatprep.subr.mxu0 0.0
  %393 = vmatpush1.msra.mxu0 %v19
  %394 = vmatprep.subr.mxu0 0.0
  %395 = vmatpush1.msra.mxu0 %v20
  %396 = vmatprep.subr.mxu0 0.0
  %397 = vmatpush1.msra.mxu0 0.0
  %398 = vmatprep.subr.mxu0 0.0
  %399 = vmatpush1.msra.mxu0 0.0
  %400 = vmatprep.subr.mxu0 0.0
  %401 = vmatpush1.msra.mxu0 0.0
  %402 = vmatprep.subr.mxu0 0.0
  %403 = vmatpush1.msra.mxu0 0.0
  %404 = vmatprep.subr.mxu0 0.0
  %405 = vmatpush1.msra.mxu0 0.0
  %406 = vmatprep.subr.mxu0 0.0
  %407 = vmatpush1.msra.mxu0 0.0
  %408 = vmatprep.subr.mxu0 0.0
  %409 = vmatpush1.msra.mxu0 0.0
  %410 = vmatprep.subr.mxu0 0.0
  %411 = vmatpush1.msra.mxu0 0.0
  %412 = vmatprep.subr.mxu0 0.0
  %413 = vmatpush1.msra.mxu0 0.0
  %414 = vmatprep.subr.mxu0 0.0
  %415 = vmatpush1.msra.mxu0 0.0
  %416 = vmatprep.subr.mxu0 0.0
  %417 = vmatpush1.msra.mxu0 0.0
  %418 = vmatprep.subr.mxu0 0.0
  %419 = vmatpush1.msra.mxu0 0.0
  %420 = vmatprep.subr.mxu0 0.0
  %421 = vmatpush1.msra.mxu0 0.0
  %422 = vmatprep.subr.mxu0 0.0
  %423 = vmatpush1.msra.mxu0 0.0
  %424 = vmatprep.subr.mxu0 0.0
  %425 = vmatpush1.msra.mxu0 0.0
  %426 = vmatprep.subr.mxu0 0.0
  %427 = vmatpush1.msra.mxu0 0.0
  %428 = vmatprep.subr.mxu0 0.0
  %429 = vmatpush1.msra.mxu0 0.0
  %430 = vmatprep.subr.mxu0 0.0
  %431 = vmatpush1.msra.mxu0 0.0
  %432 = vmatprep.subr.mxu0 0.0
  %433 = vmatpush1.msra.mxu0 0.0
  %434 = vmatprep.subr.mxu0 0.0
  %435 = vmatpush1.msra.mxu0 0.0
  %436 = vmatprep.subr.mxu0 0.0
  %437 = vmatpush1.msra.mxu0 0.0
  %438 = vmatprep.subr.mxu0 0.0
  %439 = vmatpush1.msra.mxu0 0.0
  %440 = vmatprep.subr.mxu0 0.0
  %441 = vmatpush1.msra.mxu0 0.0
  %442 = vmatprep.subr.mxu0 0.0
  %443 = vmatpush1.msra.mxu0 0.0
  %444 = vmatprep.subr.mxu0 0.0
  %445 = vmatpush1.msra.mxu0 0.0
  %446 = vmatprep.subr.mxu0 0.0
  %447 = vmatpush1.msra.mxu0 0.0
  %448 = vmatprep.subr.mxu0 0.0
  %449 = vmatpush1.msra.mxu0 0.0
  %450 = vmatprep.subr.mxu0 0.0
  %451 = vmatpush1.msra.mxu0 0.0
  %452 = vmatprep.mubr.f32.mxu0 0.0
  %453 = vmatmul.mubr.f32.gmra.mrb[0].mxu0 %v386
  %v454 = vpop.f32.mrb[0].mxu0
  %v455 = vadd.f32 0.0, %v454
  %v456 = vpop.f32.mrb[0].mxu0
  %457 = vdwg.mxu0
  %v458 = vadd.f32 %v145, %v455
  %v459 = vxor.u32 %v458, 2147483648
  %v460 = vmul.f32 %v459, 1.442695
  %v461 = vpow.pop %v460
  %v462 = vadd.f32 %v461, 1.0
  %v463 = vrcp.pop %v462
  %v464 = vmul.f32 1.0, %v463
  %v465 = vtanh.pop %v458
  %v466 = vmul.f32 %v464, %v374
  %468 = vrot.lane.b32.xlu0 %v465, 32
  %v469 = vpop.permute.xlu0 %468
  %v471 = vmul.f32 %v464, %v469
  %473 = vrot.lane.b32.xlu0 %v471, 32
  %v474 = vpop.permute.xlu0 %473
  %v476 = vadd.f32 %v466, %v474
  %v477 = vtanh.pop %v476
  %479 = vrot.lane.b32.xlu0 %v477, 32
  %v480 = vpop.permute.xlu0 %479
  %v482 = vmul.f32 %v464, %v480
  %484 = vrot.lane.b32.xlu0 %v482, 64
  %v485 = vpop.permute.xlu0 %484
  %487 = vst.msk [vmem:[#allocation2 + $0x10] sm:$0xff] %vm176, %v485
  %v488 = vsel %vm176, %v485, 0
  %490 = vmatprep.subr.mxu0 0.0
  %491 = vmatpush1.msra.mxu0 %v17
  %492 = vmatprep.subr.mxu0 0.0
  %493 = vmatpush1.msra.mxu0 %v18
  %494 = vmatprep.subr.mxu0 0.0
  %495 = vmatpush1.msra.mxu0 %v19
  %496 = vmatprep.subr.mxu0 0.0
  %497 = vmatpush1.msra.mxu0 %v20
  %498 = vmatprep.subr.mxu0 0.0
  %499 = vmatpush1.msra.mxu0 0.0
  %500 = vmatprep.subr.mxu0 0.0
  %501 = vmatpush1.msra.mxu0 0.0
  %502 = vmatprep.subr.mxu0 0.0
  %503 = vmatpush1.msra.mxu0 0.0
  %504 = vmatprep.subr.mxu0 0.0
  %505 = vmatpush1.msra.mxu0 0.0
  %506 = vmatprep.subr.mxu0 0.0
  %507 = vmatpush1.msra.mxu0 0.0
  %508 = vmatprep.subr.mxu0 0.0
  %509 = vmatpush1.msra.mxu0 0.0
  %510 = vmatprep.subr.mxu0 0.0
  %511 = vmatpush1.msra.mxu0 0.0
  %512 = vmatprep.subr.mxu0 0.0
  %513 = vmatpush1.msra.mxu0 0.0
  %514 = vmatprep.subr.mxu0 0.0
  %515 = vmatpush1.msra.mxu0 0.0
  %516 = vmatprep.subr.mxu0 0.0
  %517 = vmatpush1.msra.mxu0 0.0
  %518 = vmatprep.subr.mxu0 0.0
  %519 = vmatpush1.msra.mxu0 0.0
  %520 = vmatprep.subr.mxu0 0.0
  %521 = vmatpush1.msra.mxu0 0.0
  %522 = vmatprep.subr.mxu0 0.0
  %523 = vmatpush1.msra.mxu0 0.0
  %524 = vmatprep.subr.mxu0 0.0
  %525 = vmatpush1.msra.mxu0 0.0
  %526 = vmatprep.subr.mxu0 0.0
  %527 = vmatpush1.msra.mxu0 0.0
  %528 = vmatprep.subr.mxu0 0.0
  %529 = vmatpush1.msra.mxu0 0.0
  %530 = vmatprep.subr.mxu0 0.0
  %531 = vmatpush1.msra.mxu0 0.0
  %532 = vmatprep.subr.mxu0 0.0
  %533 = vmatpush1.msra.mxu0 0.0
  %534 = vmatprep.subr.mxu0 0.0
  %535 = vmatpush1.msra.mxu0 0.0
  %536 = vmatprep.subr.mxu0 0.0
  %537 = vmatpush1.msra.mxu0 0.0
  %538 = vmatprep.subr.mxu0 0.0
  %539 = vmatpush1.msra.mxu0 0.0
  %540 = vmatprep.subr.mxu0 0.0
  %541 = vmatpush1.msra.mxu0 0.0
  %542 = vmatprep.subr.mxu0 0.0
  %543 = vmatpush1.msra.mxu0 0.0
  %544 = vmatprep.subr.mxu0 0.0
  %545 = vmatpush1.msra.mxu0 0.0
  %546 = vmatprep.subr.mxu0 0.0
  %547 = vmatpush1.msra.mxu0 0.0
  %548 = vmatprep.subr.mxu0 0.0
  %549 = vmatpush1.msra.mxu0 0.0
  %550 = vmatprep.subr.mxu0 0.0
  %551 = vmatpush1.msra.mxu0 0.0
  %552 = vmatprep.subr.mxu0 0.0
  %553 = vmatpush1.msra.mxu0 0.0
  %554 = vmatprep.mubr.f32.mxu0 0.0
  %555 = vmatmul.mubr.f32.gmra.mrb[0].mxu0 %v488
  %v556 = vpop.f32.mrb[0].mxu0
  %v557 = vadd.f32 0.0, %v556
  %v558 = vpop.f32.mrb[0].mxu0
  %559 = vdwg.mxu0
  %v560 = vadd.f32 %v150, %v557
  %v561 = vxor.u32 %v560, 2147483648
  %v562 = vmul.f32 %v561, 1.442695
  %v563 = vpow.pop %v562
  %v564 = vadd.f32 %v563, 1.0
  %v565 = vrcp.pop %v564
  %v566 = vmul.f32 1.0, %v565
  %v567 = vtanh.pop %v560
  %v568 = vmul.f32 %v566, %v476
  %570 = vrot.lane.b32.xlu0 %v567, 32
  %v571 = vpop.permute.xlu0 %570
  %v573 = vmul.f32 %v566, %v571
  %575 = vrot.lane.b32.xlu0 %v573, 32
  %v576 = vpop.permute.xlu0 %575
  %v578 = vadd.f32 %v568, %v576
  %v579 = vtanh.pop %v578
  %581 = vrot.lane.b32.xlu0 %v579, 32
  %v582 = vpop.permute.xlu0 %581
  %v584 = vmul.f32 %v566, %v582
  %586 = vrot.lane.b32.xlu0 %v584, 64
  %v587 = vpop.permute.xlu0 %586
  %589 = vst.msk [vmem:[#allocation2 + $0x18] sm:$0xff] %vm176, %v587
  %v590 = vsel %vm176, %v587, 0
  %592 = vmatprep.subr.mxu0 0.0
  %593 = vmatpush1.msra.mxu0 %v17
  %594 = vmatprep.subr.mxu0 0.0
  %595 = vmatpush1.msra.mxu0 %v18
  %596 = vmatprep.subr.mxu0 0.0
  %597 = vmatpush1.msra.mxu0 %v19
  %598 = vmatprep.subr.mxu0 0.0
  %599 = vmatpush1.msra.mxu0 %v20
  %600 = vmatprep.subr.mxu0 0.0
  %601 = vmatpush1.msra.mxu0 0.0
  %602 = vmatprep.subr.mxu0 0.0
  %603 = vmatpush1.msra.mxu0 0.0
  %604 = vmatprep.subr.mxu0 0.0
  %605 = vmatpush1.msra.mxu0 0.0
  %606 = vmatprep.subr.mxu0 0.0
  %607 = vmatpush1.msra.mxu0 0.0
  %608 = vmatprep.subr.mxu0 0.0
  %609 = vmatpush1.msra.mxu0 0.0
  %610 = vmatprep.subr.mxu0 0.0
  %611 = vmatpush1.msra.mxu0 0.0
  %612 = vmatprep.subr.mxu0 0.0
  %613 = vmatpush1.msra.mxu0 0.0
  %614 = vmatprep.subr.mxu0 0.0
  %615 = vmatpush1.msra.mxu0 0.0
  %616 = vmatprep.subr.mxu0 0.0
  %617 = vmatpush1.msra.mxu0 0.0
  %618 = vmatprep.subr.mxu0 0.0
  %619 = vmatpush1.msra.mxu0 0.0
  %620 = vmatprep.subr.mxu0 0.0
  %621 = vmatpush1.msra.mxu0 0.0
  %622 = vmatprep.subr.mxu0 0.0
  %623 = vmatpush1.msra.mxu0 0.0
  %624 = vmatprep.subr.mxu0 0.0
  %625 = vmatpush1.msra.mxu0 0.0
  %626 = vmatprep.subr.mxu0 0.0
  %627 = vmatpush1.msra.mxu0 0.0
  %628 = vmatprep.subr.mxu0 0.0
  %629 = vmatpush1.msra.mxu0 0.0
  %630 = vmatprep.subr.mxu0 0.0
  %631 = vmatpush1.msra.mxu0 0.0
  %632 = vmatprep.subr.mxu0 0.0
  %633 = vmatpush1.msra.mxu0 0.0
  %634 = vmatprep.subr.mxu0 0.0
  %635 = vmatpush1.msra.mxu0 0.0
  %636 = vmatprep.subr.mxu0 0.0
  %637 = vmatpush1.msra.mxu0 0.0
  %638 = vmatprep.subr.mxu0 0.0
  %639 = vmatpush1.msra.mxu0 0.0
  %640 = vmatprep.subr.mxu0 0.0
  %641 = vmatpush1.msra.mxu0 0.0
  %642 = vmatprep.subr.mxu0 0.0
  %643 = vmatpush1.msra.mxu0 0.0
  %644 = vmatprep.subr.mxu0 0.0
  %645 = vmatpush1.msra.mxu0 0.0
  %646 = vmatprep.subr.mxu0 0.0
  %647 = vmatpush1.msra.mxu0 0.0
  %648 = vmatprep.subr.mxu0 0.0
  %649 = vmatpush1.msra.mxu0 0.0
  %650 = vmatprep.subr.mxu0 0.0
  %651 = vmatpush1.msra.mxu0 0.0
  %652 = vmatprep.subr.mxu0 0.0
  %653 = vmatpush1.msra.mxu0 0.0
  %654 = vmatprep.subr.mxu0 0.0
  %655 = vmatpush1.msra.mxu0 0.0
  %656 = vmatprep.mubr.f32.mxu0 0.0
  %657 = vmatmul.mubr.f32.gmra.mrb[0].mxu0 %v590
  %v658 = vpop.f32.mrb[0].mxu0
  %v659 = vadd.f32 0.0, %v658
  %v660 = vpop.f32.mrb[0].mxu0
  %661 = vdwg.mxu0
  %v662 = vadd.f32 %v155, %v659
  %v663 = vxor.u32 %v662, 2147483648
  %v664 = vmul.f32 %v663, 1.442695
  %v665 = vpow.pop %v664
  %v666 = vadd.f32 %v665, 1.0
  %v667 = vrcp.pop %v666
  %v668 = vmul.f32 1.0, %v667
  %v669 = vtanh.pop %v662
  %v670 = vmul.f32 %v668, %v578
  %672 = vrot.lane.b32.xlu0 %v669, 32
  %v673 = vpop.permute.xlu0 %672
  %v675 = vmul.f32 %v668, %v673
  %677 = vrot.lane.b32.xlu0 %v675, 32
  %v678 = vpop.permute.xlu0 %677
  %v680 = vadd.f32 %v670, %v678
  %v681 = vtanh.pop %v680
  %683 = vrot.lane.b32.xlu0 %v681, 32
  %v684 = vpop.permute.xlu0 %683
  %v686 = vmul.f32 %v668, %v684
  %688 = vrot.lane.b32.xlu0 %v686, 64
  %v689 = vpop.permute.xlu0 %688
  %691 = vst.msk [vmem:[#allocation2 + $0x20] sm:$0xff] %vm176, %v689
  %v692 = vsel %vm176, %v689, 0
  %694 = vmatprep.subr.mxu0 0.0
  %695 = vmatpush1.msra.mxu0 %v17
  %696 = vmatprep.subr.mxu0 0.0
  %697 = vmatpush1.msra.mxu0 %v18
  %698 = vmatprep.subr.mxu0 0.0
  %699 = vmatpush1.msra.mxu0 %v19
  %700 = vmatprep.subr.mxu0 0.0
  %701 = vmatpush1.msra.mxu0 %v20
  %702 = vmatprep.subr.mxu0 0.0
  %703 = vmatpush1.msra.mxu0 0.0
  %704 = vmatprep.subr.mxu0 0.0
  %705 = vmatpush1.msra.mxu0 0.0
  %706 = vmatprep.subr.mxu0 0.0
  %707 = vmatpush1.msra.mxu0 0.0
  %708 = vmatprep.subr.mxu0 0.0
  %709 = vmatpush1.msra.mxu0 0.0
  %710 = vmatprep.subr.mxu0 0.0
  %711 = vmatpush1.msra.mxu0 0.0
  %712 = vmatprep.subr.mxu0 0.0
  %713 = vmatpush1.msra.mxu0 0.0
  %714 = vmatprep.subr.mxu0 0.0
  %715 = vmatpush1.msra.mxu0 0.0
  %716 = vmatprep.subr.mxu0 0.0
  %717 = vmatpush1.msra.mxu0 0.0
  %718 = vmatprep.subr.mxu0 0.0
  %719 = vmatpush1.msra.mxu0 0.0
  %720 = vmatprep.subr.mxu0 0.0
  %721 = vmatpush1.msra.mxu0 0.0
  %722 = vmatprep.subr.mxu0 0.0
  %723 = vmatpush1.msra.mxu0 0.0
  %724 = vmatprep.subr.mxu0 0.0
  %725 = vmatpush1.msra.mxu0 0.0
  %726 = vmatprep.subr.mxu0 0.0
  %727 = vmatpush1.msra.mxu0 0.0
  %728 = vmatprep.subr.mxu0 0.0
  %729 = vmatpush1.msra.mxu0 0.0
  %730 = vmatprep.subr.mxu0 0.0
  %731 = vmatpush1.msra.mxu0 0.0
  %732 = vmatprep.subr.mxu0 0.0
  %733 = vmatpush1.msra.mxu0 0.0
  %734 = vmatprep.subr.mxu0 0.0
  %735 = vmatpush1.msra.mxu0 0.0
  %736 = vmatprep.subr.mxu0 0.0
  %737 = vmatpush1.msra.mxu0 0.0
  %738 = vmatprep.subr.mxu0 0.0
  %739 = vmatpush1.msra.mxu0 0.0
  %740 = vmatprep.subr.mxu0 0.0
  %741 = vmatpush1.msra.mxu0 0.0
  %742 = vmatprep.subr.mxu0 0.0
  %743 = vmatpush1.msra.mxu0 0.0
  %744 = vmatprep.subr.mxu0 0.0
  %745 = vmatpush1.msra.mxu0 0.0
  %746 = vmatprep.subr.mxu0 0.0
  %747 = vmatpush1.msra.mxu0 0.0
  %748 = vmatprep.subr.mxu0 0.0
  %749 = vmatpush1.msra.mxu0 0.0
  %750 = vmatprep.subr.mxu0 0.0
  %751 = vmatpush1.msra.mxu0 0.0
  %752 = vmatprep.subr.mxu0 0.0
  %753 = vmatpush1.msra.mxu0 0.0
  %754 = vmatprep.subr.mxu0 0.0
  %755 = vmatpush1.msra.mxu0 0.0
  %756 = vmatprep.subr.mxu0 0.0
  %757 = vmatpush1.msra.mxu0 0.0
  %758 = vmatprep.mubr.f32.mxu0 0.0
  %759 = vmatmul.mubr.f32.gmra.mrb[0].mxu0 %v692
  %v760 = vpop.f32.mrb[0].mxu0
  %v761 = vadd.f32 0.0, %v760
  %v762 = vpop.f32.mrb[0].mxu0
  %763 = vdwg.mxu0
  %v764 = vadd.f32 %v160, %v761
  %v765 = vxor.u32 %v764, 2147483648
  %v766 = vmul.f32 %v765, 1.442695
  %v767 = vpow.pop %v766
  %v768 = vadd.f32 %v767, 1.0
  %v769 = vrcp.pop %v768
  %v770 = vmul.f32 1.0, %v769
  %v771 = vtanh.pop %v764
  %v772 = vmul.f32 %v770, %v680
  %774 = vrot.lane.b32.xlu0 %v771, 32
  %v775 = vpop.permute.xlu0 %774
  %v777 = vmul.f32 %v770, %v775
  %779 = vrot.lane.b32.xlu0 %v777, 32
  %v780 = vpop.permute.xlu0 %779
  %v782 = vadd.f32 %v772, %v780
  %v783 = vtanh.pop %v782
  %785 = vrot.lane.b32.xlu0 %v783, 32
  %v786 = vpop.permute.xlu0 %785
  %v788 = vmul.f32 %v770, %v786
  %790 = vrot.lane.b32.xlu0 %v788, 64
  %v791 = vpop.permute.xlu0 %790
  %793 = vst.msk [vmem:[#allocation2 + $0x28] sm:$0xff] %vm176, %v791
  %v794 = vsel %vm176, %v791, 0
  %796 = vmatprep.subr.mxu0 0.0
  %797 = vmatpush1.msra.mxu0 %v17
  %798 = vmatprep.subr.mxu0 0.0
  %799 = vmatpush1.msra.mxu0 %v18
  %800 = vmatprep.subr.mxu0 0.0
  %801 = vmatpush1.msra.mxu0 %v19
  %802 = vmatprep.subr.mxu0 0.0
  %803 = vmatpush1.msra.mxu0 %v20
  %804 = vmatprep.subr.mxu0 0.0
  %805 = vmatpush1.msra.mxu0 0.0
  %806 = vmatprep.subr.mxu0 0.0
  %807 = vmatpush1.msra.mxu0 0.0
  %808 = vmatprep.subr.mxu0 0.0
  %809 = vmatpush1.msra.mxu0 0.0
  %810 = vmatprep.subr.mxu0 0.0
  %811 = vmatpush1.msra.mxu0 0.0
  %812 = vmatprep.subr.mxu0 0.0
  %813 = vmatpush1.msra.mxu0 0.0
  %814 = vmatprep.subr.mxu0 0.0
  %815 = vmatpush1.msra.mxu0 0.0
  %816 = vmatprep.subr.mxu0 0.0
  %817 = vmatpush1.msra.mxu0 0.0
  %818 = vmatprep.subr.mxu0 0.0
  %819 = vmatpush1.msra.mxu0 0.0
  %820 = vmatprep.subr.mxu0 0.0
  %821 = vmatpush1.msra.mxu0 0.0
  %822 = vmatprep.subr.mxu0 0.0
  %823 = vmatpush1.msra.mxu0 0.0
  %824 = vmatprep.subr.mxu0 0.0
  %825 = vmatpush1.msra.mxu0 0.0
  %826 = vmatprep.subr.mxu0 0.0
  %827 = vmatpush1.msra.mxu0 0.0
  %828 = vmatprep.subr.mxu0 0.0
  %829 = vmatpush1.msra.mxu0 0.0
  %830 = vmatprep.subr.mxu0 0.0
  %831 = vmatpush1.msra.mxu0 0.0
  %832 = vmatprep.subr.mxu0 0.0
  %833 = vmatpush1.msra.mxu0 0.0
  %834 = vmatprep.subr.mxu0 0.0
  %835 = vmatpush1.msra.mxu0 0.0
  %836 = vmatprep.subr.mxu0 0.0
  %837 = vmatpush1.msra.mxu0 0.0
  %838 = vmatprep.subr.mxu0 0.0
  %839 = vmatpush1.msra.mxu0 0.0
  %840 = vmatprep.subr.mxu0 0.0
  %841 = vmatpush1.msra.mxu0 0.0
  %842 = vmatprep.subr.mxu0 0.0
  %843 = vmatpush1.msra.mxu0 0.0
  %844 = vmatprep.subr.mxu0 0.0
  %845 = vmatpush1.msra.mxu0 0.0
  %846 = vmatprep.subr.mxu0 0.0
  %847 = vmatpush1.msra.mxu0 0.0
  %848 = vmatprep.subr.mxu0 0.0
  %849 = vmatpush1.msra.mxu0 0.0
  %850 = vmatprep.subr.mxu0 0.0
  %851 = vmatpush1.msra.mxu0 0.0
  %852 = vmatprep.subr.mxu0 0.0
  %853 = vmatpush1.msra.mxu0 0.0
  %854 = vmatprep.subr.mxu0 0.0
  %855 = vmatpush1.msra.mxu0 0.0
  %856 = vmatprep.subr.mxu0 0.0
  %857 = vmatpush1.msra.mxu0 0.0
  %858 = vmatprep.subr.mxu0 0.0
  %859 = vmatpush1.msra.mxu0 0.0
  %860 = vmatprep.mubr.f32.mxu0 0.0
  %861 = vmatmul.mubr.f32.gmra.mrb[0].mxu0 %v794
  %v862 = vpop.f32.mrb[0].mxu0
  %v863 = vadd.f32 0.0, %v862
  %v864 = vpop.f32.mrb[0].mxu0
  %865 = vdwg.mxu0
  %v866 = vadd.f32 %v165, %v863
  %v867 = vxor.u32 %v866, 2147483648
  %v868 = vmul.f32 %v867, 1.442695
  %v869 = vpow.pop %v868
  %v870 = vadd.f32 %v869, 1.0
  %v871 = vrcp.pop %v870
  %v872 = vmul.f32 1.0, %v871
  %v873 = vtanh.pop %v866
  %v874 = vmul.f32 %v872, %v782
  %876 = vrot.lane.b32.xlu0 %v873, 32
  %v877 = vpop.permute.xlu0 %876
  %v879 = vmul.f32 %v872, %v877
  %881 = vrot.lane.b32.xlu0 %v879, 32
  %v882 = vpop.permute.xlu0 %881
  %v884 = vadd.f32 %v874, %v882
  %v885 = vtanh.pop %v884
  %887 = vrot.lane.b32.xlu0 %v885, 32
  %v888 = vpop.permute.xlu0 %887
  %v890 = vmul.f32 %v872, %v888
  %892 = vrot.lane.b32.xlu0 %v890, 64
  %v893 = vpop.permute.xlu0 %892
  %895 = vst.msk [vmem:[#allocation2 + $0x30] sm:$0xff] %vm176, %v893
  %v896 = vsel %vm176, %v893, 0
  %898 = vmatprep.subr.mxu0 0.0
  %899 = vmatpush1.msra.mxu0 %v17
  %900 = vmatprep.subr.mxu0 0.0
  %901 = vmatpush1.msra.mxu0 %v18
  %902 = vmatprep.subr.mxu0 0.0
  %903 = vmatpush1.msra.mxu0 %v19
  %904 = vmatprep.subr.mxu0 0.0
  %905 = vmatpush1.msra.mxu0 %v20
  %906 = vmatprep.subr.mxu0 0.0
  %907 = vmatpush1.msra.mxu0 0.0
  %908 = vmatprep.subr.mxu0 0.0
  %909 = vmatpush1.msra.mxu0 0.0
  %910 = vmatprep.subr.mxu0 0.0
  %911 = vmatpush1.msra.mxu0 0.0
  %912 = vmatprep.subr.mxu0 0.0
  %913 = vmatpush1.msra.mxu0 0.0
  %914 = vmatprep.subr.mxu0 0.0
  %915 = vmatpush1.msra.mxu0 0.0
  %916 = vmatprep.subr.mxu0 0.0
  %917 = vmatpush1.msra.mxu0 0.0
  %918 = vmatprep.subr.mxu0 0.0
  %919 = vmatpush1.msra.mxu0 0.0
  %920 = vmatprep.subr.mxu0 0.0
  %921 = vmatpush1.msra.mxu0 0.0
  %922 = vmatprep.subr.mxu0 0.0
  %923 = vmatpush1.msra.mxu0 0.0
  %924 = vmatprep.subr.mxu0 0.0
  %925 = vmatpush1.msra.mxu0 0.0
  %926 = vmatprep.subr.mxu0 0.0
  %927 = vmatpush1.msra.mxu0 0.0
  %928 = vmatprep.subr.mxu0 0.0
  %929 = vmatpush1.msra.mxu0 0.0
  %930 = vmatprep.subr.mxu0 0.0
  %931 = vmatpush1.msra.mxu0 0.0
  %932 = vmatprep.subr.mxu0 0.0
  %933 = vmatpush1.msra.mxu0 0.0
  %934 = vmatprep.subr.mxu0 0.0
  %935 = vmatpush1.msra.mxu0 0.0
  %936 = vmatprep.subr.mxu0 0.0
  %937 = vmatpush1.msra.mxu0 0.0
  %938 = vmatprep.subr.mxu0 0.0
  %939 = vmatpush1.msra.mxu0 0.0
  %940 = vmatprep.subr.mxu0 0.0
  %941 = vmatpush1.msra.mxu0 0.0
  %942 = vmatprep.subr.mxu0 0.0
  %943 = vmatpush1.msra.mxu0 0.0
  %944 = vmatprep.subr.mxu0 0.0
  %945 = vmatpush1.msra.mxu0 0.0
  %946 = vmatprep.subr.mxu0 0.0
  %947 = vmatpush1.msra.mxu0 0.0
  %948 = vmatprep.subr.mxu0 0.0
  %949 = vmatpush1.msra.mxu0 0.0
  %950 = vmatprep.subr.mxu0 0.0
  %951 = vmatpush1.msra.mxu0 0.0
  %952 = vmatprep.subr.mxu0 0.0
  %953 = vmatpush1.msra.mxu0 0.0
  %954 = vmatprep.subr.mxu0 0.0
  %955 = vmatpush1.msra.mxu0 0.0
  %956 = vmatprep.subr.mxu0 0.0
  %957 = vmatpush1.msra.mxu0 0.0
  %958 = vmatprep.subr.mxu0 0.0
  %959 = vmatpush1.msra.mxu0 0.0
  %960 = vmatprep.subr.mxu0 0.0
  %961 = vmatpush1.msra.mxu0 0.0
  %962 = vmatprep.mubr.f32.mxu0 0.0
  %963 = vmatmul.mubr.f32.gmra.mrb[0].mxu0 %v896
  %v964 = vpop.f32.mrb[0].mxu0
  %v965 = vadd.f32 0.0, %v964
  %v966 = vpop.f32.mrb[0].mxu0
  %967 = vdwg.mxu0
  %v968 = vadd.f32 %v170, %v965
  %v969 = vxor.u32 %v968, 2147483648
  %v970 = vmul.f32 %v969, 1.442695
  %v971 = vpow.pop %v970
  %v972 = vadd.f32 %v971, 1.0
  %v973 = vrcp.pop %v972
  %v974 = vmul.f32 1.0, %v973
  %v975 = vtanh.pop %v968
  %v976 = vmul.f32 %v974, %v884
  %978 = vrot.lane.b32.xlu0 %v975, 32
  %v979 = vpop.permute.xlu0 %978
  %v981 = vmul.f32 %v974, %v979
  %983 = vrot.lane.b32.xlu0 %v981, 32
  %v984 = vpop.permute.xlu0 %983
  %v986 = vadd.f32 %v976, %v984
  %v987 = vtanh.pop %v986
  %989 = vrot.lane.b32.xlu0 %v987, 32
  %v990 = vpop.permute.xlu0 %989
  %v992 = vmul.f32 %v974, %v990
  %994 = vrot.lane.b32.xlu0 %v992, 64
  %v995 = vpop.permute.xlu0 %994
  %997 = vst.msk [vmem:[#allocation2 + $0x38] sm:$0xff] %vm176, %v995
  %998 = vst.msk [vmem:[%s4] sm:$0xff] %vm176, %v995
  %1000 = vrot.lane.b32.xlu0 %v986, 96
  %v1001 = vpop.permute.xlu0 %1000
  %s1003 = scalar_lea.vmem %s4, 8
  %1004 = vst.msk [vmem:[%s1003] sm:$0xff] %vm176, %v1001
  %v1005 = vld [vmem:[#allocation2] sm:$0xff]
  %v1006 = vld [vmem:[#allocation2 + $0x8] sm:$0xff]
  %v1007 = vld [vmem:[#allocation2 + $0x10] sm:$0xff]
  %v1008 = vld [vmem:[#allocation2 + $0x18] sm:$0xff]
  %v1009 = vld [vmem:[#allocation2 + $0x20] sm:$0xff]
  %v1010 = vld [vmem:[#allocation2 + $0x28] sm:$0xff]
  %v1011 = vld [vmem:[#allocation2 + $0x30] sm:$0xff]
  %v1012 = vld [vmem:[#allocation2 + $0x38] sm:$0xff]
  %v1013 = vlaneseq
  %v1014 = vshrl.u32 %v1013, 7
  %v1015 = vsub.s32 0, %v1014
  %v1016 = vrot.slane %v26, %v1015
  %v1018 = vsel %vm176, %v1005, 0
  %v1021 = vsel %vm176, %v1006, 0
  %v1024 = vsel %vm176, %v1007, 0
  %v1027 = vsel %vm176, %v1008, 0
  %v1030 = vsel %vm176, %v1009, 0
  %v1033 = vsel %vm176, %v1010, 0
  %v1036 = vsel %vm176, %v1011, 0
  %v1039 = vsel %vm176, %v1012, 0
  %1041 = vmatprep.subr.mxu0 0.0
  %1042 = vmatpush1.msra.mxu0 %v22
  %1043 = vmatprep.subr.mxu0 0.0
  %1044 = vmatpush1.msra.mxu0 %v23
  %1045 = vmatprep.subr.mxu0 0.0
  %1046 = vmatpush1.msra.mxu0 %v24
  %1047 = vmatprep.subr.mxu0 0.0
  %1048 = vmatpush1.msra.mxu0 %v25
  %1049 = vmatprep.subr.mxu0 0.0
  %1050 = vmatpush1.msra.mxu0 0.0
  %1051 = vmatprep.subr.mxu0 0.0
  %1052 = vmatpush1.msra.mxu0 0.0
  %1053 = vmatprep.subr.mxu0 0.0
  %1054 = vmatpush1.msra.mxu0 0.0
  %1055 = vmatprep.subr.mxu0 0.0
  %1056 = vmatpush1.msra.mxu0 0.0
  %1057 = vmatprep.subr.mxu0 0.0
  %1058 = vmatpush1.msra.mxu0 0.0
  %1059 = vmatprep.subr.mxu0 0.0
  %1060 = vmatpush1.msra.mxu0 0.0
  %1061 = vmatprep.subr.mxu0 0.0
  %1062 = vmatpush1.msra.mxu0 0.0
  %1063 = vmatprep.subr.mxu0 0.0
  %1064 = vmatpush1.msra.mxu0 0.0
  %1065 = vmatprep.subr.mxu0 0.0
  %1066 = vmatpush1.msra.mxu0 0.0
  %1067 = vmatprep.subr.mxu0 0.0
  %1068 = vmatpush1.msra.mxu0 0.0
  %1069 = vmatprep.subr.mxu0 0.0
  %1070 = vmatpush1.msra.mxu0 0.0
  %1071 = vmatprep.subr.mxu0 0.0
  %1072 = vmatpush1.msra.mxu0 0.0
  %1073 = vmatprep.subr.mxu0 0.0
  %1074 = vmatpush1.msra.mxu0 0.0
  %1075 = vmatprep.subr.mxu0 0.0
  %1076 = vmatpush1.msra.mxu0 0.0
  %1077 = vmatprep.subr.mxu0 0.0
  %1078 = vmatpush1.msra.mxu0 0.0
  %1079 = vmatprep.subr.mxu0 0.0
  %1080 = vmatpush1.msra.mxu0 0.0
  %1081 = vmatprep.subr.mxu0 0.0
  %1082 = vmatpush1.msra.mxu0 0.0
  %1083 = vmatprep.subr.mxu0 0.0
  %1084 = vmatpush1.msra.mxu0 0.0
  %1085 = vmatprep.subr.mxu0 0.0
  %1086 = vmatpush1.msra.mxu0 0.0
  %1087 = vmatprep.subr.mxu0 0.0
  %1088 = vmatpush1.msra.mxu0 0.0
  %1089 = vmatprep.subr.mxu0 0.0
  %1090 = vmatpush1.msra.mxu0 0.0
  %1091 = vmatprep.subr.mxu0 0.0
  %1092 = vmatpush1.msra.mxu0 0.0
  %1093 = vmatprep.subr.mxu0 0.0
  %1094 = vmatpush1.msra.mxu0 0.0
  %1095 = vmatprep.subr.mxu0 0.0
  %1096 = vmatpush1.msra.mxu0 0.0
  %1097 = vmatprep.subr.mxu0 0.0
  %1098 = vmatpush1.msra.mxu0 0.0
  %1099 = vmatprep.subr.mxu0 0.0
  %1100 = vmatpush1.msra.mxu0 0.0
  %1101 = vmatprep.subr.mxu0 0.0
  %1102 = vmatpush1.msra.mxu0 0.0
  %1103 = vmatprep.subr.mxu0 0.0
  %1104 = vmatpush1.msra.mxu0 0.0
  %1105 = vmatprep.mubr.f32.mxu0 0.0
  %1106 = vmatmul.mubr.f32.gmra.mrb[0].mxu0 %v1018
  %v1107 = vpop.f32.mrb[0].mxu0
  %v1108 = vadd.f32 %v1016, %v1107
  %v1109 = vpop.f32.mrb[0].mxu0
  %1110 = vmatprep.mubr.f32.mxu0 0.0
  %1111 = vmatmul.mubr.f32.gmra.mrb[0].mxu0 %v1021
  %v1112 = vpop.f32.mrb[0].mxu0
  %v1113 = vadd.f32 %v1016, %v1112
  %v1114 = vpop.f32.mrb[0].mxu0
  %1115 = vmatprep.mubr.f32.mxu0 0.0
  %1116 = vmatmul.mubr.f32.gmra.mrb[0].mxu0 %v1024
  %v1117 = vpop.f32.mrb[0].mxu0
  %v1118 = vadd.f32 %v1016, %v1117
  %v1119 = vpop.f32.mrb[0].mxu0
  %1120 = vmatprep.mubr.f32.mxu0 0.0
  %1121 = vmatmul.mubr.f32.gmra.mrb[0].mxu0 %v1027
  %v1122 = vpop.f32.mrb[0].mxu0
  %v1123 = vadd.f32 %v1016, %v1122
  %v1124 = vpop.f32.mrb[0].mxu0
  %1125 = vmatprep.mubr.f32.mxu0 0.0
  %1126 = vmatmul.mubr.f32.gmra.mrb[0].mxu0 %v1030
  %v1127 = vpop.f32.mrb[0].mxu0
  %v1128 = vadd.f32 %v1016, %v1127
  %v1129 = vpop.f32.mrb[0].mxu0
  %1130 = vmatprep.mubr.f32.mxu0 0.0
  %1131 = vmatmul.mubr.f32.gmra.mrb[0].mxu0 %v1033
  %v1132 = vpop.f32.mrb[0].mxu0
  %v1133 = vadd.f32 %v1016, %v1132
  %v1134 = vpop.f32.mrb[0].mxu0
  %1135 = vmatprep.mubr.f32.mxu0 0.0
  %1136 = vmatmul.mubr.f32.gmra.mrb[0].mxu0 %v1036
  %v1137 = vpop.f32.mrb[0].mxu0
  %v1138 = vadd.f32 %v1016, %v1137
  %v1139 = vpop.f32.mrb[0].mxu0
  %1140 = vmatprep.mubr.f32.mxu0 0.0
  %1141 = vmatmul.mubr.f32.gmra.mrb[0].mxu0 %v1039
  %v1142 = vpop.f32.mrb[0].mxu0
  %v1143 = vadd.f32 %v1016, %v1142
  %v1144 = vpop.f32.mrb[0].mxu0
  %1145 = vdwg.mxu0
  %1146 = vmax.xlane.f32.xlu0 %v1108
  %v1147 = vpop.xlane.xlu0 %1146
  %1148 = vmax.xlane.f32.xlu0 %v1113
  %v1149 = vpop.xlane.xlu0 %1148
  %1150 = vmax.xlane.f32.xlu0 %v1118
  %v1151 = vpop.xlane.xlu0 %1150
  %1152 = vmax.xlane.f32.xlu0 %v1123
  %v1153 = vpop.xlane.xlu0 %1152
  %1154 = vmax.xlane.f32.xlu0 %v1128
  %v1155 = vpop.xlane.xlu0 %1154
  %1156 = vmax.xlane.f32.xlu0 %v1133
  %v1157 = vpop.xlane.xlu0 %1156
  %1158 = vmax.xlane.f32.xlu0 %v1138
  %v1159 = vpop.xlane.xlu0 %1158
  %1160 = vmax.xlane.f32.xlu0 %v1143
  %v1161 = vpop.xlane.xlu0 %1160
  %v1162 = vsub.f32 %v1108, %v1147
  %v1163 = vsub.f32 %v1113, %v1149
  %v1164 = vsub.f32 %v1118, %v1151
  %v1165 = vsub.f32 %v1123, %v1153
  %v1166 = vsub.f32 %v1128, %v1155
  %v1167 = vsub.f32 %v1133, %v1157
  %v1168 = vsub.f32 %v1138, %v1159
  %v1169 = vsub.f32 %v1143, %v1161
  %v1170 = vmul.f32 %v1162, 1.442695
  %v1171 = vpow.pop %v1170
  %v1172 = vmul.f32 %v1163, 1.442695
  %v1173 = vpow.pop %v1172
  %v1174 = vmul.f32 %v1164, 1.442695
  %v1175 = vpow.pop %v1174
  %v1176 = vmul.f32 %v1165, 1.442695
  %v1177 = vpow.pop %v1176
  %v1178 = vmul.f32 %v1166, 1.442695
  %v1179 = vpow.pop %v1178
  %v1180 = vmul.f32 %v1167, 1.442695
  %v1181 = vpow.pop %v1180
  %v1182 = vmul.f32 %v1168, 1.442695
  %v1183 = vpow.pop %v1182
  %v1184 = vmul.f32 %v1169, 1.442695
  %v1185 = vpow.pop %v1184
  %1186 = vadd.xlane.f32.xlu0 %v1171
  %v1187 = vpop.xlane.xlu0 %1186
  %1188 = vadd.xlane.f32.xlu0 %v1173
  %v1189 = vpop.xlane.xlu0 %1188
  %1190 = vadd.xlane.f32.xlu0 %v1175
  %v1191 = vpop.xlane.xlu0 %1190
  %1192 = vadd.xlane.f32.xlu0 %v1177
  %v1193 = vpop.xlane.xlu0 %1192
  %1194 = vadd.xlane.f32.xlu0 %v1179
  %v1195 = vpop.xlane.xlu0 %1194
  %1196 = vadd.xlane.f32.xlu0 %v1181
  %v1197 = vpop.xlane.xlu0 %1196
  %1198 = vadd.xlane.f32.xlu0 %v1183
  %v1199 = vpop.xlane.xlu0 %1198
  %1200 = vadd.xlane.f32.xlu0 %v1185
  %v1201 = vpop.xlane.xlu0 %1200
  %v1202 = vlog2.pop %v1187
  %v1203 = vmul.f32 %v1202, 0.6931472
  %v1204 = vlog2.pop %v1189
  %v1205 = vmul.f32 %v1204, 0.6931472
  %v1206 = vlog2.pop %v1191
  %v1207 = vmul.f32 %v1206, 0.6931472
  %v1208 = vlog2.pop %v1193
  %v1209 = vmul.f32 %v1208, 0.6931472
  %v1210 = vlog2.pop %v1195
  %v1211 = vmul.f32 %v1210, 0.6931472
  %v1212 = vlog2.pop %v1197
  %v1213 = vmul.f32 %v1212, 0.6931472
  %v1214 = vlog2.pop %v1199
  %v1215 = vmul.f32 %v1214, 0.6931472
  %v1216 = vlog2.pop %v1201
  %v1217 = vmul.f32 %v1216, 0.6931472
  %v1218 = vsub.f32 %v1162, %v1203
  %v1219 = vsub.f32 %v1163, %v1205
  %v1220 = vsub.f32 %v1164, %v1207
  %v1221 = vsub.f32 %v1165, %v1209
  %v1222 = vsub.f32 %v1166, %v1211
  %v1223 = vsub.f32 %v1167, %v1213
  %v1224 = vsub.f32 %v1168, %v1215
  %v1225 = vsub.f32 %v1169, %v1217
  %1226 = vst [vmem:[%s3] sm:$0xff] %v1218
  %1227 = vst [vmem:[%s3 + $0x8] sm:$0xff] %v1219
  %1228 = vst [vmem:[%s3 + $0x10] sm:$0xff] %v1220
  %1229 = vst [vmem:[%s3 + $0x18] sm:$0xff] %v1221
  %1230 = vst [vmem:[%s3 + $0x20] sm:$0xff] %v1222
  %1231 = vst [vmem:[%s3 + $0x28] sm:$0xff] %v1223
  %1232 = vst [vmem:[%s3 + $0x30] sm:$0xff] %v1224
  %1233 = vst [vmem:[%s3 + $0x38] sm:$0xff] %v1225
  // Predicated region
  $region14: #{single_lstm_forward.1} parent=0 // pred_check
    _
  $region15: #{single_lstm_forward.1} parent=0 // pred_check_branch
    %1235 = sbr.rel (0) target = $region17
  $region16: #{single_lstm_forward.1} parent=0 // pred_region
    _
  $region17: #{single_lstm_forward.1} parent=0 // pred_fallthru
    _
  // Predicated region
  $region18: #{single_lstm_forward.1} parent=0 // pred_check
    _
  $region19: #{single_lstm_forward.1} parent=0 // pred_check_branch
    %1237 = sbr.rel (0) target = $region21
  $region20: #{single_lstm_forward.1} parent=0 // pred_region
    _
  $region21: #{single_lstm_forward.1} parent=0 // pred_fallthru
    _
  // Predicated region
  $region22: #{single_lstm_forward.1} parent=0 // pred_check
    _
  $region23: #{single_lstm_forward.1} parent=0 // pred_check_branch
    %1239 = sbr.rel (0) target = $region25
  $region24: #{single_lstm_forward.1} parent=0 // pred_region
    _
  $region25: #{single_lstm_forward.1} parent=0 // pred_fallthru
    _
  // Predicated region
  $region26: #{single_lstm_forward.1} parent=0 // pred_check
    _
  $region27: #{single_lstm_forward.1} parent=0 // pred_check_branch
    %1241 = sbr.rel (0) target = $region29
  $region28: #{single_lstm_forward.1} parent=0 // pred_region
    _
  $region29: #{single_lstm_forward.1} parent=0 // pred_fallthru
    _

</llo_original>
